<compile_context>
chip_gen: v5e
topology: v5e:2x2
jax: 0.10.0
libtpu: 0.0.40
codegen_flags: <defaults>
</compile_context>

<pallas_src>
import functools
import math

import jax
import jax.numpy as jnp
from jax import lax
from jax.experimental import pallas as pl
from jax.experimental.pallas import tpu as pltpu

_MASK_VALUE = -1e30                  # finite "-inf": avoids NaN from (-inf)-(-inf)
_VMEM_LIMIT = 32 * 1024 * 1024       # explicit scoped-VMEM budget (safe on v5e/v6e/v7x)


def _pick_tile(dim, target, granule):
    """Largest divisor of `dim` that is <= target and a multiple of `granule`;
    falls back to the full dim (always a legal Pallas block size)."""
    if dim <= target:
        return dim
    t = (target // granule) * granule
    while t >= granule:
        if dim % t == 0:
            return t
        t -= granule
    return dim


# ---------------------------------------------------------------------------
# Kernel 1: grouped tiled linear   y[g] = x @ w[g].T + b[g]
#   x: (M, Din), w: (G, Dout, Din)  (PyTorch (out,in) layout), b: (G, 1, Dout)
# ---------------------------------------------------------------------------
def _linear_kernel(x_ref, w_ref, b_ref, o_ref, acc_ref):
    k = pl.program_id(3)                       # reduction axis (last in grid)

    @pl.when(k == 0)
    def _init():
        acc_ref[...] = jnp.zeros_like(acc_ref)

    # Contract the last dims of x (tm, tk) and w (tn, tk) directly — the
    # (out, in) weight layout feeds the MXU without any transpose.
    acc_ref[...] += lax.dot_general(
        x_ref[...], w_ref[0],
        dimension_numbers=(((1,), (1,)), ((), ())),
        preferred_element_type=jnp.float32)

    @pl.when(k == pl.num_programs(3) - 1)
    def _finalize():
        o_ref[0] = (acc_ref[...] + b_ref[0].astype(jnp.float32)).astype(o_ref.dtype)


def grouped_linear(x2d, w, b, *, tm_target=256, tn_target=512, tk_target=512):
    """x2d: (M, Din), w: (G, Dout, Din), b: (G, Dout) -> (G, M, Dout)."""
    M, Din = x2d.shape
    G, Dout, _ = w.shape
    tm = _pick_tile(M, tm_target, 8)
    tn = _pick_tile(Dout, tn_target, 128)
    tk = _pick_tile(Din, tk_target, 128)
    grid = (G, M // tm, Dout // tn, Din // tk)

    return pl.pallas_call(
        _linear_kernel,
        out_shape=jax.ShapeDtypeStruct((G, M, Dout), x2d.dtype),
        grid_spec=pltpu.PrefetchScalarGridSpec(
            num_scalar_prefetch=0,
            grid=grid,
            in_specs=[
                pl.BlockSpec((tm, tk), lambda g, i, j, k: (i, k)),
                pl.BlockSpec((1, tn, tk), lambda g, i, j, k: (g, j, k)),
                pl.BlockSpec((1, 1, tn), lambda g, i, j, k: (g, 0, j)),
            ],
            out_specs=pl.BlockSpec((1, tm, tn), lambda g, i, j, k: (g, i, j)),
            scratch_shapes=[pltpu.VMEM((tm, tn), jnp.float32)],
        ),
        compiler_params=pltpu.CompilerParams(
            dimension_semantics=("parallel", "parallel", "parallel", "arbitrary"),
            vmem_limit_bytes=_VMEM_LIMIT),
    )(x2d, w, b.reshape(G, 1, Dout))


# ---------------------------------------------------------------------------
# Kernel 2: causal flash attention over a (3, B, S, D) qkv slab.
#   Heads stay packed along D (lane-dense); online softmax across kv tiles.
# ---------------------------------------------------------------------------
def _flash_attn_kernel(q_ref, k_ref, v_ref, o_ref, m_sc, l_sc, acc_sc,
                       *, scale, num_heads, tq, tk):
    qi = pl.program_id(1)
    ki = pl.program_id(2)
    nk = pl.num_programs(2)
    D = o_ref.shape[-1]
    hd = D // num_heads

    q_start = qi * tq
    kv_start = ki * tk

    @pl.when(ki == 0)
    def _init():
        m_sc[...] = jnp.full_like(m_sc, _MASK_VALUE)
        l_sc[...] = jnp.zeros_like(l_sc)
        acc_sc[...] = jnp.zeros_like(acc_sc)

    # Skip kv blocks that lie entirely above the causal diagonal.
    @pl.when(kv_start <= q_start + (tq - 1))
    def _compute():
        q = q_ref[0, 0]                      # (tq, D), all heads packed on lanes
        k = k_ref[0, 0]                      # (tk, D)
        v = v_ref[0, 0]                      # (tk, D)

        # Causal mask for this (q-tile, kv-tile): keep where col <= row.
        # Computed once, reused by every head.
        row = q_start + lax.broadcasted_iota(jnp.int32, (tq, tk), 0)
        col = kv_start + lax.broadcasted_iota(jnp.int32, (tq, tk), 1)
        keep = col <= row

        for h in range(num_heads):           # static unroll over heads
            sl = slice(h * hd, (h + 1) * hd)
            # Scores: contract last dims of q_h / k_h directly (no explicit .T).
            s = lax.dot_general(
                q[:, sl], k[:, sl],
                dimension_numbers=(((1,), (1,)), ((), ())),
                preferred_element_type=jnp.float32) * scale        # (tq, tk) f32
            s = jnp.where(keep, s, _MASK_VALUE)

            m_prev = m_sc[:, sl]                                   # (tq, hd), lanes equal
            m_new = jnp.maximum(m_prev, jnp.max(s, axis=-1, keepdims=True))
            alpha = jnp.exp(m_prev - m_new)                        # (tq, hd)
            p = jnp.where(keep, jnp.exp(s - m_new[:, 0:1]), 0.0)   # (tq, tk) f32
            l_sc[:, sl] = alpha * l_sc[:, sl] + jnp.sum(p, axis=-1, keepdims=True)
            acc_sc[:, sl] = alpha * acc_sc[:, sl] + lax.dot_general(
                p.astype(v.dtype), v[:, sl],
                dimension_numbers=(((1,), (0,)), ((), ())),
                preferred_element_type=jnp.float32)
            m_sc[:, sl] = m_new

    @pl.when(ki == nk - 1)
    def _finalize():
        l = l_sc[...]
        inv = pl.reciprocal(l, approx=True)       # EUP slot
        inv = inv * (2.0 - l * inv)               # one Newton step -> ~f32-exact
        # Single lane-dense store of all heads at once (last dim = D).
        o_ref[0] = (acc_sc[...] * inv).astype(o_ref.dtype)


def flash_causal_attention(qkv3, num_heads, *, tq_target=128, tk_target=128):
    """qkv3: (3, B, S, D) with chunk 0=q, 1=k, 2=v; heads packed along D.
    Returns (B, S, D) = per-head softmax(q k^T * scale + causal) @ v."""
    _, B, S, D = qkv3.shape
    hd = D // num_heads
    scale = hd ** (-0.5)
    tq = _pick_tile(S, tq_target, 8)
    tk = _pick_tile(S, tk_target, 8)
    nq, nk = S // tq, S // tk

    kernel = functools.partial(_flash_attn_kernel, scale=scale,
                               num_heads=num_heads, tq=tq, tk=tk)

    itemsize = jnp.dtype(qkv3.dtype).itemsize
    cost = pl.CostEstimate(
        flops=2 * B * S * S * D,                        # ~causal half of both matmuls
        transcendentals=B * num_heads * S * S // 2,     # exp() in the online softmax
        bytes_accessed=(2 + 2 * nq) * B * S * D * itemsize)

    return pl.pallas_call(
        kernel,
        out_shape=jax.ShapeDtypeStruct((B, S, D), qkv3.dtype),
        grid_spec=pltpu.PrefetchScalarGridSpec(
            num_scalar_prefetch=0,
            grid=(B, nq, nk),
            in_specs=[
                pl.BlockSpec((1, 1, tq, D), lambda b, qi, ki: (0, b, qi, 0)),  # q
                pl.BlockSpec((1, 1, tk, D), lambda b, qi, ki: (1, b, ki, 0)),  # k
                pl.BlockSpec((1, 1, tk, D), lambda b, qi, ki: (2, b, ki, 0)),  # v
            ],
            out_specs=pl.BlockSpec((1, tq, D), lambda b, qi, ki: (b, qi, 0)),
            scratch_shapes=[
                pltpu.VMEM((tq, D), jnp.float32),   # running max (per head, lane-broadcast)
                pltpu.VMEM((tq, D), jnp.float32),   # running sum
                pltpu.VMEM((tq, D), jnp.float32),   # running output accumulator
            ],
        ),
        compiler_params=pltpu.CompilerParams(
            dimension_semantics=("parallel", "parallel", "arbitrary"),
            vmem_limit_bytes=_VMEM_LIMIT),
        cost_estimate=cost,
    )(qkv3, qkv3, qkv3)


# ---------------------------------------------------------------------------
# Full module forward (only free, contiguous reshapes outside the kernels).
# ---------------------------------------------------------------------------
def multi_head_attention(x, params, num_heads):
    """params = (w_qkv (3D,D), b_qkv (3D,), w_proj (D,D), b_proj (D,)) in
    PyTorch nn.Linear (out, in) layout — never transposed here."""
    B, S, D = x.shape
    w_qkv, b_qkv, w_proj, b_proj = params

    x2d = x.reshape(B * S, D)

    # qkv projection written directly as a (3, B*S, D) slab so the attention
    # kernel picks q/k/v (and every head) purely via BlockSpec index_maps.
    # The weight/bias reshapes are contiguous (no data movement); in production
    # they would be stored pre-reshaped once.
    qkv = grouped_linear(x2d, w_qkv.reshape(3, D, D), b_qkv.reshape(3, D))
    qkv = qkv.reshape(3, B, S, D)

    attn = flash_causal_attention(qkv, num_heads)          # (B, S, D), lane-dense

    out = grouped_linear(attn.reshape(B * S, D),
                         w_proj.reshape(1, D, D), b_proj.reshape(1, D))
    return out.reshape(B, S, D)


# ---------------------------------------------------------------------------
# Pure-JAX reference (mirrors the PyTorch forward, eval mode).
# ---------------------------------------------------------------------------
def reference(x, params, num_heads):
    B, S, D = x.shape
    hd = D // num_heads
    w_qkv, b_qkv, w_proj, b_proj = params
    qkv = x @ w_qkv.T + b_qkv
    q, k, v = jnp.split(qkv, 3, axis=-1)
    q, k, v = [t.reshape(B, S, num_heads, hd).transpose(0, 2, 1, 3)
               for t in (q, k, v)]
    att = jnp.einsum("bhqd,bhkd->bhqk", q, k) * (hd ** -0.5)
    mask = jnp.triu(jnp.ones((S, S), bool), k=1)
    att = jnp.where(mask[None, None], -jnp.inf, att)
    att = jax.nn.softmax(att, axis=-1)
    out = jnp.einsum("bhqk,bhkd->bhqd", att, v)
    out = out.transpose(0, 2, 1, 3).reshape(B, S, D)
    return out @ w_proj.T + b_proj


def _make_params(key, D):
    kw1, kb1, kw2, kb2 = jax.random.split(key, 4)
    bound = 1.0 / math.sqrt(D)
    w_qkv = jax.random.uniform(kw1, (3 * D, D), jnp.float32, -bound, bound)
    b_qkv = jax.random.uniform(kb1, (3 * D,), jnp.float32, -bound, bound)
    w_proj = jax.random.uniform(kw2, (D, D), jnp.float32, -bound, bound)
    b_proj = jax.random.uniform(kb2, (D,), jnp.float32, -bound, bound)
    return (w_qkv, b_qkv, w_proj, b_proj)


if __name__ == "__main__":
    key = jax.random.PRNGKey(0)

    # --- Case 1: module config num_heads=4, dim=32; input (B=2, S=8, D=32) ---
    B, S, D, H = 2, 8, 32, 4
    kx, kp = jax.random.split(key)
    params = _make_params(kp, D)
    x = jax.random.normal(kx, (B, S, D), jnp.float32)

    fwd = jax.jit(lambda xx, pp: multi_head_attention(xx, pp, H))
    out = jax.block_until_ready(fwd(x, params))
    ref = reference(x, params, H)
    assert out.shape == (B, S, D)
    assert jnp.allclose(out, ref, atol=1e-3, rtol=1e-3), "mismatch vs reference (case 1)"

    # --- Case 2: exercises multi-tile flash path (q/kv tiling + causal skip) ---
    B2, S2, D2, H2 = 2, 256, 128, 4
    kx2, kp2 = jax.random.split(jax.random.PRNGKey(1))
    params2 = _make_params(kp2, D2)
    x2 = jax.random.normal(kx2, (B2, S2, D2), jnp.float32)

    fwd2 = jax.jit(lambda xx, pp: multi_head_attention(xx, pp, H2))
    out2 = jax.block_until_ready(fwd2(x2, params2))
    ref2 = reference(x2, params2, H2)
    assert out2.shape == (B2, S2, D2)
    assert jnp.allclose(out2, ref2, atol=1e-3, rtol=1e-3), "mismatch vs reference (case 2)"

    print("KERNEL_OK")
</pallas_src>

<mosaic_0001>
module attributes {stable_mosaic.version = 11 : i64} {
  func.func @_linear_kernel(%arg0: i32, %arg1: i32, %arg2: i32, %arg3: i32, %arg4: memref<16x32xf32, #tpu.memory_space<vmem>>, %arg5: memref<1x32x32xf32, #tpu.memory_space<vmem>>, %arg6: memref<1x1x32xf32, #tpu.memory_space<vmem>>, %arg7: memref<1x16x32xf32, #tpu.memory_space<vmem>>, %arg8: memref<16x32xf32, #tpu.memory_space<vmem>>) attributes {dimension_semantics = [#tpu.dimension_semantics<parallel>, #tpu.dimension_semantics<parallel>, #tpu.dimension_semantics<parallel>, #tpu.dimension_semantics<arbitrary>], iteration_bounds = array<i64: 3, 1, 1, 1>, scalar_prefetch = 0 : i64, scratch_operands = 1 : i64, tpu.core_type = #tpu.core_type<tc>, window_params = [{transform_indices = @transform_0, window_bounds = array<i64: 16, 32>}, {transform_indices = @transform_1, window_bounds = array<i64: 1, 32, 32>}, {transform_indices = @transform_2, window_bounds = array<i64: 1, 1, 32>}, {transform_indices = @transform_3, window_bounds = array<i64: 1, 16, 32>}]} {
    %c0_i32 = arith.constant 0 : i32
    %0 = arith.cmpi eq, %arg3, %c0_i32 : i32
    %1 = arith.extui %0 : i1 to i32
    %c0_i32_0 = arith.constant 0 : i32
    %2 = arith.cmpi ne, %1, %c0_i32_0 : i32
    scf.if %2 {
      %cst_11 = arith.constant 0.000000e+00 : f32
      %13 = vector.broadcast %cst_11 : f32 to vector<16x32xf32>
      %c0_12 = arith.constant 0 : index
      %c0_13 = arith.constant 0 : index
      %14 = vector.load %arg8[%c0_12, %c0_13] : memref<16x32xf32, #tpu.memory_space<vmem>>, vector<16x32xf32>
      tpu.vector_store %arg8[%c0_12, %c0_13], %13 {strides = array<i32>} : memref<16x32xf32, #tpu.memory_space<vmem>>, vector<16x32xf32>,
    } else {
    }
    %c0 = arith.constant 0 : index
    %c0_1 = arith.constant 0 : index
    %3 = vector.load %arg8[%c0, %c0_1] : memref<16x32xf32, #tpu.memory_space<vmem>>, vector<16x32xf32>
    %c0_2 = arith.constant 0 : index
    %c0_3 = arith.constant 0 : index
    %4 = vector.load %arg4[%c0_2, %c0_3] : memref<16x32xf32, #tpu.memory_space<vmem>>, vector<16x32xf32>
    %c0_4 = arith.constant 0 : index
    %c0_5 = arith.constant 0 : index
    %c0_6 = arith.constant 0 : index
    %5 = vector.load %arg5[%c0_4, %c0_5, %c0_6] : memref<1x32x32xf32, #tpu.memory_space<vmem>>, vector<1x32x32xf32>
    %6 = vector.shape_cast %5 : vector<1x32x32xf32> to vector<32x32xf32>
    %cst = arith.constant dense<0.000000e+00> : vector<16x32xf32>
    %7 = tpu.matmul %4, %6, %cst {dimension_numbers = #tpu.dot_dimension_numbers<[1], [1], [0], [0], [0, 0, 1, 0], [], []>} : vector<16x32xf32>, vector<32x32xf32>, vector<16x32xf32> -> vector<16x32xf32>
    %8 = arith.addf %3, %7 : vector<16x32xf32>
    %c0_7 = arith.constant 0 : index
    %c0_8 = arith.constant 0 : index
    %9 = vector.load %arg8[%c0_7, %c0_8] : memref<16x32xf32, #tpu.memory_space<vmem>>, vector<16x32xf32>
    tpu.vector_store %arg8[%c0_7, %c0_8], %8 {strides = array<i32>} : memref<16x32xf32, #tpu.memory_space<vmem>>, vector<16x32xf32>,
    %c0_i32_9 = arith.constant 0 : i32
    %10 = arith.cmpi eq, %arg3, %c0_i32_9 : i32
    %11 = arith.extui %10 : i1 to i32
    %c0_i32_10 = arith.constant 0 : i32
    %12 = arith.cmpi ne, %11, %c0_i32_10 : i32
    scf.if %12 {
      %c0_11 = arith.constant 0 : index
      %c0_12 = arith.constant 0 : index
      %13 = vector.load %arg8[%c0_11, %c0_12] : memref<16x32xf32, #tpu.memory_space<vmem>>, vector<16x32xf32>
      %c0_13 = arith.constant 0 : index
      %c0_14 = arith.constant 0 : index
      %c0_15 = arith.constant 0 : index
      %14 = vector.load %arg6[%c0_13, %c0_14, %c0_15] : memref<1x1x32xf32, #tpu.memory_space<vmem>>, vector<1x1x32xf32>
      %15 = vector.shape_cast %14 : vector<1x1x32xf32> to vector<1x32xf32>
      %16 = vector.broadcast %15 : vector<1x32xf32> to vector<16x32xf32>
      %17 = arith.addf %13, %16 : vector<16x32xf32>
      %c0_16 = arith.constant 0 : index
      %c0_17 = arith.constant 0 : index
      %c0_18 = arith.constant 0 : index
      %18 = vector.load %arg7[%c0_16, %c0_17, %c0_18] : memref<1x16x32xf32, #tpu.memory_space<vmem>>, vector<1x16x32xf32>
      %19 = vector.shape_cast %18 : vector<1x16x32xf32> to vector<16x32xf32>
      %20 = vector.shape_cast %17 : vector<16x32xf32> to vector<1x16x32xf32>
      tpu.vector_store %arg7[%c0_16, %c0_17, %c0_18], %20 {strides = array<i32>} : memref<1x16x32xf32, #tpu.memory_space<vmem>>, vector<1x16x32xf32>,
    } else {
    }
    return
  }
  func.func @transform_0(%arg0: i32, %arg1: i32, %arg2: i32, %arg3: i32) -> (i32, i32) {
    %c0_i32 = arith.constant 0 : i32
    return %arg1, %arg3 : i32, i32
  }
  func.func @transform_1(%arg0: i32, %arg1: i32, %arg2: i32, %arg3: i32) -> (i32, i32, i32) {
    %c0_i32 = arith.constant 0 : i32
    return %arg0, %arg2, %arg3 : i32, i32, i32
  }
  func.func @transform_2(%arg0: i32, %arg1: i32, %arg2: i32, %arg3: i32) -> (i32, i32, i32) {
    %c0_i32 = arith.constant 0 : i32
    %c0_i32_0 = arith.constant 0 : i32
    return %arg0, %c0_i32, %arg2 : i32, i32, i32
  }
  func.func @transform_3(%arg0: i32, %arg1: i32, %arg2: i32, %arg3: i32) -> (i32, i32, i32) {
    %c0_i32 = arith.constant 0 : i32
    return %arg0, %arg1, %arg2 : i32, i32, i32
  }
}

module attributes {stable_mosaic.version = 11 : i64} {
  func.func @_flash_attn_kernel(%arg0: i32, %arg1: i32, %arg2: i32, %arg3: memref<1x1x8x32xf32, #tpu.memory_space<vmem>>, %arg4: memref<1x1x8x32xf32, #tpu.memory_space<vmem>>, %arg5: memref<1x1x8x32xf32, #tpu.memory_space<vmem>>, %arg6: memref<1x8x32xf32, #tpu.memory_space<vmem>>, %arg7: memref<8x32xf32, #tpu.memory_space<vmem>>, %arg8: memref<8x32xf32, #tpu.memory_space<vmem>>, %arg9: memref<8x32xf32, #tpu.memory_space<vmem>>) attributes {dimension_semantics = [#tpu.dimension_semantics<parallel>, #tpu.dimension_semantics<parallel>, #tpu.dimension_semantics<arbitrary>], iteration_bounds = array<i64: 2, 1, 1>, scalar_prefetch = 0 : i64, scratch_operands = 3 : i64, tpu.core_type = #tpu.core_type<tc>, window_params = [{transform_indices = @transform_0, window_bounds = array<i64: 1, 1, 8, 32>}, {transform_indices = @transform_1, window_bounds = array<i64: 1, 1, 8, 32>}, {transform_indices = @transform_2, window_bounds = array<i64: 1, 1, 8, 32>}, {transform_indices = @transform_3, window_bounds = array<i64: 1, 8, 32>}]} {
    %c8_i32 = arith.constant 8 : i32
    %0 = arith.muli %arg1, %c8_i32 : i32
    %c8_i32_0 = arith.constant 8 : i32
    %1 = arith.muli %arg2, %c8_i32_0 : i32
    %c0_i32 = arith.constant 0 : i32
    %2 = arith.cmpi eq, %arg2, %c0_i32 : i32
    %3 = arith.extui %2 : i1 to i32
    %c0_i32_1 = arith.constant 0 : i32
    %4 = arith.cmpi ne, %3, %c0_i32_1 : i32
    scf.if %4 {
      %cst = arith.constant -1.000000e+30 : f32
      %12 = vector.broadcast %cst : f32 to vector<8x32xf32>
      %c0 = arith.constant 0 : index
      %c0_5 = arith.constant 0 : index
      %13 = vector.load %arg7[%c0, %c0_5] : memref<8x32xf32, #tpu.memory_space<vmem>>, vector<8x32xf32>
      tpu.vector_store %arg7[%c0, %c0_5], %12 {strides = array<i32>} : memref<8x32xf32, #tpu.memory_space<vmem>>, vector<8x32xf32>,
      %cst_6 = arith.constant 0.000000e+00 : f32
      %14 = vector.broadcast %cst_6 : f32 to vector<8x32xf32>
      %c0_7 = arith.constant 0 : index
      %c0_8 = arith.constant 0 : index
      %15 = vector.load %arg8[%c0_7, %c0_8] : memref<8x32xf32, #tpu.memory_space<vmem>>, vector<8x32xf32>
      tpu.vector_store %arg8[%c0_7, %c0_8], %14 {strides = array<i32>} : memref<8x32xf32, #tpu.memory_space<vmem>>, vector<8x32xf32>,
      %cst_9 = arith.constant 0.000000e+00 : f32
      %16 = vector.broadcast %cst_9 : f32 to vector<8x32xf32>
      %c0_10 = arith.constant 0 : index
      %c0_11 = arith.constant 0 : index
      %17 = vector.load %arg9[%c0_10, %c0_11] : memref<8x32xf32, #tpu.memory_space<vmem>>, vector<8x32xf32>
      tpu.vector_store %arg9[%c0_10, %c0_11], %16 {strides = array<i32>} : memref<8x32xf32, #tpu.memory_space<vmem>>, vector<8x32xf32>,
    } else {
    }
    %c7_i32 = arith.constant 7 : i32
    %5 = arith.addi %0, %c7_i32 : i32
    %6 = arith.cmpi sle, %1, %5 : i32
    %7 = arith.extui %6 : i1 to i32
    %c0_i32_2 = arith.constant 0 : i32
    %8 = arith.cmpi ne, %7, %c0_i32_2 : i32
    scf.if %8 {
      %c0 = arith.constant 0 : index
      %c0_5 = arith.constant 0 : index
      %c0_6 = arith.constant 0 : index
      %c0_7 = arith.constant 0 : index
      %12 = vector.load %arg3[%c0, %c0_5, %c0_6, %c0_7] : memref<1x1x8x32xf32, #tpu.memory_space<vmem>>, vector<1x1x8x32xf32>
      %13 = vector.shape_cast %12 : vector<1x1x8x32xf32> to vector<8x32xf32>
      %c0_8 = arith.constant 0 : index
      %c0_9 = arith.constant 0 : index
      %c0_10 = arith.constant 0 : index
      %c0_11 = arith.constant 0 : index
      %14 = vector.load %arg4[%c0_8, %c0_9, %c0_10, %c0_11] : memref<1x1x8x32xf32, #tpu.memory_space<vmem>>, vector<1x1x8x32xf32>
      %15 = vector.shape_cast %14 : vector<1x1x8x32xf32> to vector<8x32xf32>
      %c0_12 = arith.constant 0 : index
      %c0_13 = arith.constant 0 : index
      %c0_14 = arith.constant 0 : index
      %c0_15 = arith.constant 0 : index
      %16 = vector.load %arg5[%c0_12, %c0_13, %c0_14, %c0_15] : memref<1x1x8x32xf32, #tpu.memory_space<vmem>>, vector<1x1x8x32xf32>
      %17 = vector.shape_cast %16 : vector<1x1x8x32xf32> to vector<8x32xf32>
      %18 = tpu.iota {dimensions = array<i32: 0>} : vector<8x8xi32>
      %19 = vector.broadcast %0 : i32 to vector<8x8xi32>
      %20 = arith.addi %19, %18 : vector<8x8xi32>
      %21 = tpu.iota {dimensions = array<i32: 1>} : vector<8x8xi32>
      %22 = vector.broadcast %1 : i32 to vector<8x8xi32>
      %23 = arith.addi %22, %21 : vector<8x8xi32>
      %24 = arith.cmpi sle, %23, %20 : vector<8x8xi32>
      %25 = vector.extract_strided_slice %13 {offsets = [0, 0], sizes = [8, 8], strides = [1, 1]} : vector<8x32xf32> to vector<8x8xf32>
      %26 = vector.extract_strided_slice %15 {offsets = [0, 0], sizes = [8, 8], strides = [1, 1]} : vector<8x32xf32> to vector<8x8xf32>
      %cst = arith.constant dense<0.000000e+00> : vector<8x8xf32>
      %27 = tpu.matmul %25, %26, %cst {dimension_numbers = #tpu.dot_dimension_numbers<[1], [1], [0], [0], [0, 0, 1, 0], [], []>} : vector<8x8xf32>, vector<8x8xf32>, vector<8x8xf32> -> vector<8x8xf32>
      %cst_16 = arith.constant 0.353553385 : f32
      %28 = vector.broadcast %cst_16 : f32 to vector<8x8xf32>
      %29 = arith.mulf %27, %28 : vector<8x8xf32>
      %cst_17 = arith.constant -1.000000e+30 : f32
      %30 = vector.broadcast %cst_17 : f32 to vector<8x8xf32>
      %31 = arith.select %24, %29, %30 : vector<8x8xi1>, vector<8x8xf32>
      %c0_18 = arith.constant 0 : index
      %c0_19 = arith.constant 0 : index
      %32 = vector.load %arg7[%c0_18, %c0_19] : memref<8x32xf32, #tpu.memory_space<vmem>>, vector<8x8xf32>
      %cst_20 = arith.constant dense<0xFF800000> : vector<8xf32>
      %33 = vector.multi_reduction <maximumf>, %31, %cst_20 [1] : vector<8x8xf32> to vector<8xf32>
      %34 = vector.shape_cast %33 : vector<8xf32> to vector<8x1xf32>
      %35 = vector.broadcast %34 : vector<8x1xf32> to vector<8x8xf32>
      %36 = arith.maximumf %32, %35 : vector<8x8xf32>
      %37 = arith.subf %32, %36 : vector<8x8xf32>
      %38 = math.exp %37 : vector<8x8xf32>
      %39 = vector.extract_strided_slice %36 {offsets = [0, 0], sizes = [8, 1], strides = [1, 1]} : vector<8x8xf32> to vector<8x1xf32>
      %40 = vector.broadcast %39 : vector<8x1xf32> to vector<8x8xf32>
      %41 = arith.subf %31, %40 : vector<8x8xf32>
      %42 = math.exp %41 : vector<8x8xf32>
      %cst_21 = arith.constant 0.000000e+00 : f32
      %43 = vector.broadcast %cst_21 : f32 to vector<8x8xf32>
      %44 = arith.select %24, %42, %43 : vector<8x8xi1>, vector<8x8xf32>
      %c0_22 = arith.constant 0 : index
      %c0_23 = arith.constant 0 : index
      %45 = vector.load %arg8[%c0_22, %c0_23] : memref<8x32xf32, #tpu.memory_space<vmem>>, vector<8x8xf32>
      %46 = arith.mulf %38, %45 : vector<8x8xf32>
      %cst_24 = arith.constant dense<0.000000e+00> : vector<8xf32>
      %47 = vector.multi_reduction <add>, %44, %cst_24 [1] : vector<8x8xf32> to vector<8xf32>
      %48 = vector.shape_cast %47 : vector<8xf32> to vector<8x1xf32>
      %49 = vector.broadcast %48 : vector<8x1xf32> to vector<8x8xf32>
      %50 = arith.addf %46, %49 : vector<8x8xf32>
      %c0_25 = arith.constant 0 : index
      %c0_26 = arith.constant 0 : index
      %51 = vector.load %arg8[%c0_25, %c0_26] : memref<8x32xf32, #tpu.memory_space<vmem>>, vector<8x8xf32>
      tpu.vector_store %arg8[%c0_25, %c0_26], %50 {strides = array<i32>} : memref<8x32xf32, #tpu.memory_space<vmem>>, vector<8x8xf32>,
      %c0_27 = arith.constant 0 : index
      %c0_28 = arith.constant 0 : index
      %52 = vector.load %arg9[%c0_27, %c0_28] : memref<8x32xf32, #tpu.memory_space<vmem>>, vector<8x8xf32>
      %53 = arith.mulf %38, %52 : vector<8x8xf32>
      %54 = vector.extract_strided_slice %17 {offsets = [0, 0], sizes = [8, 8], strides = [1, 1]} : vector<8x32xf32> to vector<8x8xf32>
      %cst_29 = arith.constant dense<0.000000e+00> : vector<8x8xf32>
      %55 = tpu.matmul %44, %54, %cst_29 {dimension_numbers = #tpu.dot_dimension_numbers<[1], [0], [0], [1], [0, 0, 1, 1], [], []>} : vector<8x8xf32>, vector<8x8xf32>, vector<8x8xf32> -> vector<8x8xf32>
      %56 = arith.addf %53, %55 : vector<8x8xf32>
      %c0_30 = arith.constant 0 : index
      %c0_31 = arith.constant 0 : index
      %57 = vector.load %arg9[%c0_30, %c0_31] : memref<8x32xf32, #tpu.memory_space<vmem>>, vector<8x8xf32>
      tpu.vector_store %arg9[%c0_30, %c0_31], %56 {strides = array<i32>} : memref<8x32xf32, #tpu.memory_space<vmem>>, vector<8x8xf32>,
      %c0_32 = arith.constant 0 : index
      %c0_33 = arith.constant 0 : index
      %58 = vector.load %arg7[%c0_32, %c0_33] : memref<8x32xf32, #tpu.memory_space<vmem>>, vector<8x8xf32>
      tpu.vector_store %arg7[%c0_32, %c0_33], %36 {strides = array<i32>} : memref<8x32xf32, #tpu.memory_space<vmem>>, vector<8x8xf32>,
      %59 = vector.extract_strided_slice %13 {offsets = [0, 8], sizes = [8, 8], strides = [1, 1]} : vector<8x32xf32> to vector<8x8xf32>
      %60 = vector.extract_strided_slice %15 {offsets = [0, 8], sizes = [8, 8], strides = [1, 1]} : vector<8x32xf32> to vector<8x8xf32>
      %cst_34 = arith.constant dense<0.000000e+00> : vector<8x8xf32>
      %61 = tpu.matmul %59, %60, %cst_34 {dimension_numbers = #tpu.dot_dimension_numbers<[1], [1], [0], [0], [0, 0, 1, 0], [], []>} : vector<8x8xf32>, vector<8x8xf32>, vector<8x8xf32> -> vector<8x8xf32>
      %cst_35 = arith.constant 0.353553385 : f32
      %62 = vector.broadcast %cst_35 : f32 to vector<8x8xf32>
      %63 = arith.mulf %61, %62 : vector<8x8xf32>
      %cst_36 = arith.constant -1.000000e+30 : f32
      %64 = vector.broadcast %cst_36 : f32 to vector<8x8xf32>
      %65 = arith.select %24, %63, %64 : vector<8x8xi1>, vector<8x8xf32>
      %c0_37 = arith.constant 0 : index
      %c8 = arith.constant 8 : index
      %66 = vector.load %arg7[%c0_37, %c8] : memref<8x32xf32, #tpu.memory_space<vmem>>, vector<8x8xf32>
      %cst_38 = arith.constant dense<0xFF800000> : vector<8xf32>
      %67 = vector.multi_reduction <maximumf>, %65, %cst_38 [1] : vector<8x8xf32> to vector<8xf32>
      %68 = vector.shape_cast %67 : vector<8xf32> to vector<8x1xf32>
      %69 = vector.broadcast %68 : vector<8x1xf32> to vector<8x8xf32>
      %70 = arith.maximumf %66, %69 : vector<8x8xf32>
      %71 = arith.subf %66, %70 : vector<8x8xf32>
      %72 = math.exp %71 : vector<8x8xf32>
      %73 = vector.extract_strided_slice %70 {offsets = [0, 0], sizes = [8, 1], strides = [1, 1]} : vector<8x8xf32> to vector<8x1xf32>
      %74 = vector.broadcast %73 : vector<8x1xf32> to vector<8x8xf32>
      %75 = arith.subf %65, %74 : vector<8x8xf32>
      %76 = math.exp %75 : vector<8x8xf32>
      %cst_39 = arith.constant 0.000000e+00 : f32
      %77 = vector.broadcast %cst_39 : f32 to vector<8x8xf32>
      %78 = arith.select %24, %76, %77 : vector<8x8xi1>, vector<8x8xf32>
      %c0_40 = arith.constant 0 : index
      %c8_41 = arith.constant 8 : index
      %79 = vector.load %arg8[%c0_40, %c8_41] : memref<8x32xf32, #tpu.memory_space<vmem>>, vector<8x8xf32>
      %80 = arith.mulf %72, %79 : vector<8x8xf32>
      %cst_42 = arith.constant dense<0.000000e+00> : vector<8xf32>
      %81 = vector.multi_reduction <add>, %78, %cst_42 [1] : vector<8x8xf32> to vector<8xf32>
      %82 = vector.shape_cast %81 : vector<8xf32> to vector<8x1xf32>
      %83 = vector.broadcast %82 : vector<8x1xf32> to vector<8x8xf32>
      %84 = arith.addf %80, %83 : vector<8x8xf32>
      %c0_43 = arith.constant 0 : index
      %c8_44 = arith.constant 8 : index
      %85 = vector.load %arg8[%c0_43, %c8_44] : memref<8x32xf32, #tpu.memory_space<vmem>>, vector<8x8xf32>
      tpu.vector_store %arg8[%c0_43, %c8_44], %84 {strides = array<i32>} : memref<8x32xf32, #tpu.memory_space<vmem>>, vector<8x8xf32>,
      %c0_45 = arith.constant 0 : index
      %c8_46 = arith.constant 8 : index
      %86 = vector.load %arg9[%c0_45, %c8_46] : memref<8x32xf32, #tpu.memory_space<vmem>>, vector<8x8xf32>
      %87 = arith.mulf %72, %86 : vector<8x8xf32>
      %88 = vector.extract_strided_slice %17 {offsets = [0, 8], sizes = [8, 8], strides = [1, 1]} : vector<8x32xf32> to vector<8x8xf32>
      %cst_47 = arith.constant dense<0.000000e+00> : vector<8x8xf32>
      %89 = tpu.matmul %78, %88, %cst_47 {dimension_numbers = #tpu.dot_dimension_numbers<[1], [0], [0], [1], [0, 0, 1, 1], [], []>} : vector<8x8xf32>, vector<8x8xf32>, vector<8x8xf32> -> vector<8x8xf32>
      %90 = arith.addf %87, %89 : vector<8x8xf32>
      %c0_48 = arith.constant 0 : index
      %c8_49 = arith.constant 8 : index
      %91 = vector.load %arg9[%c0_48, %c8_49] : memref<8x32xf32, #tpu.memory_space<vmem>>, vector<8x8xf32>
      tpu.vector_store %arg9[%c0_48, %c8_49], %90 {strides = array<i32>} : memref<8x32xf32, #tpu.memory_space<vmem>>, vector<8x8xf32>,
      %c0_50 = arith.constant 0 : index
      %c8_51 = arith.constant 8 : index
      %92 = vector.load %arg7[%c0_50, %c8_51] : memref<8x32xf32, #tpu.memory_space<vmem>>, vector<8x8xf32>
      tpu.vector_store %arg7[%c0_50, %c8_51], %70 {strides = array<i32>} : memref<8x32xf32, #tpu.memory_space<vmem>>, vector<8x8xf32>,
      %93 = vector.extract_strided_slice %13 {offsets = [0, 16], sizes = [8, 8], strides = [1, 1]} : vector<8x32xf32> to vector<8x8xf32>
      %94 = vector.extract_strided_slice %15 {offsets = [0, 16], sizes = [8, 8], strides = [1, 1]} : vector<8x32xf32> to vector<8x8xf32>
      %cst_52 = arith.constant dense<0.000000e+00> : vector<8x8xf32>
      %95 = tpu.matmul %93, %94, %cst_52 {dimension_numbers = #tpu.dot_dimension_numbers<[1], [1], [0], [0], [0, 0, 1, 0], [], []>} : vector<8x8xf32>, vector<8x8xf32>, vector<8x8xf32> -> vector<8x8xf32>
      %cst_53 = arith.constant 0.353553385 : f32
      %96 = vector.broadcast %cst_53 : f32 to vector<8x8xf32>
      %97 = arith.mulf %95, %96 : vector<8x8xf32>
      %cst_54 = arith.constant -1.000000e+30 : f32
      %98 = vector.broadcast %cst_54 : f32 to vector<8x8xf32>
      %99 = arith.select %24, %97, %98 : vector<8x8xi1>, vector<8x8xf32>
      %c0_55 = arith.constant 0 : index
      %c16 = arith.constant 16 : index
      %100 = vector.load %arg7[%c0_55, %c16] : memref<8x32xf32, #tpu.memory_space<vmem>>, vector<8x8xf32>
      %cst_56 = arith.constant dense<0xFF800000> : vector<8xf32>
      %101 = vector.multi_reduction <maximumf>, %99, %cst_56 [1] : vector<8x8xf32> to vector<8xf32>
      %102 = vector.shape_cast %101 : vector<8xf32> to vector<8x1xf32>
      %103 = vector.broadcast %102 : vector<8x1xf32> to vector<8x8xf32>
      %104 = arith.maximumf %100, %103 : vector<8x8xf32>
      %105 = arith.subf %100, %104 : vector<8x8xf32>
      %106 = math.exp %105 : vector<8x8xf32>
      %107 = vector.extract_strided_slice %104 {offsets = [0, 0], sizes = [8, 1], strides = [1, 1]} : vector<8x8xf32> to vector<8x1xf32>
      %108 = vector.broadcast %107 : vector<8x1xf32> to vector<8x8xf32>
      %109 = arith.subf %99, %108 : vector<8x8xf32>
      %110 = math.exp %109 : vector<8x8xf32>
      %cst_57 = arith.constant 0.000000e+00 : f32
      %111 = vector.broadcast %cst_57 : f32 to vector<8x8xf32>
      %112 = arith.select %24, %110, %111 : vector<8x8xi1>, vector<8x8xf32>
      %c0_58 = arith.constant 0 : index
      %c16_59 = arith.constant 16 : index
      %113 = vector.load %arg8[%c0_58, %c16_59] : memref<8x32xf32, #tpu.memory_space<vmem>>, vector<8x8xf32>
      %114 = arith.mulf %106, %113 : vector<8x8xf32>
      %cst_60 = arith.constant dense<0.000000e+00> : vector<8xf32>
      %115 = vector.multi_reduction <add>, %112, %cst_60 [1] : vector<8x8xf32> to vector<8xf32>
      %116 = vector.shape_cast %115 : vector<8xf32> to vector<8x1xf32>
      %117 = vector.broadcast %116 : vector<8x1xf32> to vector<8x8xf32>
      %118 = arith.addf %114, %117 : vector<8x8xf32>
      %c0_61 = arith.constant 0 : index
      %c16_62 = arith.constant 16 : index
      %119 = vector.load %arg8[%c0_61, %c16_62] : memref<8x32xf32, #tpu.memory_space<vmem>>, vector<8x8xf32>
      tpu.vector_store %arg8[%c0_61, %c16_62], %118 {strides = array<i32>} : memref<8x32xf32, #tpu.memory_space<vmem>>, vector<8x8xf32>,
      %c0_63 = arith.constant 0 : index
      %c16_64 = arith.constant 16 : index
      %120 = vector.load %arg9[%c0_63, %c16_64] : memref<8x32xf32, #tpu.memory_space<vmem>>, vector<8x8xf32>
      %121 = arith.mulf %106, %120 : vector<8x8xf32>
      %122 = vector.extract_strided_slice %17 {offsets = [0, 16], sizes = [8, 8], strides = [1, 1]} : vector<8x32xf32> to vector<8x8xf32>
      %cst_65 = arith.constant dense<0.000000e+00> : vector<8x8xf32>
      %123 = tpu.matmul %112, %122, %cst_65 {dimension_numbers = #tpu.dot_dimension_numbers<[1], [0], [0], [1], [0, 0, 1, 1], [], []>} : vector<8x8xf32>, vector<8x8xf32>, vector<8x8xf32> -> vector<8x8xf32>
      %124 = arith.addf %121, %123 : vector<8x8xf32>
      %c0_66 = arith.constant 0 : index
      %c16_67 = arith.constant 16 : index
      %125 = vector.load %arg9[%c0_66, %c16_67] : memref<8x32xf32, #tpu.memory_space<vmem>>, vector<8x8xf32>
      tpu.vector_store %arg9[%c0_66, %c16_67], %124 {strides = array<i32>} : memref<8x32xf32, #tpu.memory_space<vmem>>, vector<8x8xf32>,
      %c0_68 = arith.constant 0 : index
      %c16_69 = arith.constant 16 : index
      %126 = vector.load %arg7[%c0_68, %c16_69] : memref<8x32xf32, #tpu.memory_space<vmem>>, vector<8x8xf32>
      tpu.vector_store %arg7[%c0_68, %c16_69], %104 {strides = array<i32>} : memref<8x32xf32, #tpu.memory_space<vmem>>, vector<8x8xf32>,
      %127 = vector.extract_strided_slice %13 {offsets = [0, 24], sizes = [8, 8], strides = [1, 1]} : vector<8x32xf32> to vector<8x8xf32>
      %128 = vector.extract_strided_slice %15 {offsets = [0, 24], sizes = [8, 8], strides = [1, 1]} : vector<8x32xf32> to vector<8x8xf32>
      %cst_70 = arith.constant dense<0.000000e+00> : vector<8x8xf32>
      %129 = tpu.matmul %127, %128, %cst_70 {dimension_numbers = #tpu.dot_dimension_numbers<[1], [1], [0], [0], [0, 0, 1, 0], [], []>} : vector<8x8xf32>, vector<8x8xf32>, vector<8x8xf32> -> vector<8x8xf32>
      %cst_71 = arith.constant 0.353553385 : f32
      %130 = vector.broadcast %cst_71 : f32 to vector<8x8xf32>
      %131 = arith.mulf %129, %130 : vector<8x8xf32>
      %cst_72 = arith.constant -1.000000e+30 : f32
      %132 = vector.broadcast %cst_72 : f32 to vector<8x8xf32>
      %133 = arith.select %24, %131, %132 : vector<8x8xi1>, vector<8x8xf32>
      %c0_73 = arith.constant 0 : index
      %c24 = arith.constant 24 : index
      %134 = vector.load %arg7[%c0_73, %c24] : memref<8x32xf32, #tpu.memory_space<vmem>>, vector<8x8xf32>
      %cst_74 = arith.constant dense<0xFF800000> : vector<8xf32>
      %135 = vector.multi_reduction <maximumf>, %133, %cst_74 [1] : vector<8x8xf32> to vector<8xf32>
      %136 = vector.shape_cast %135 : vector<8xf32> to vector<8x1xf32>
      %137 = vector.broadcast %136 : vector<8x1xf32> to vector<8x8xf32>
      %138 = arith.maximumf %134, %137 : vector<8x8xf32>
      %139 = arith.subf %134, %138 : vector<8x8xf32>
      %140 = math.exp %139 : vector<8x8xf32>
      %141 = vector.extract_strided_slice %138 {offsets = [0, 0], sizes = [8, 1], strides = [1, 1]} : vector<8x8xf32> to vector<8x1xf32>
      %142 = vector.broadcast %141 : vector<8x1xf32> to vector<8x8xf32>
      %143 = arith.subf %133, %142 : vector<8x8xf32>
      %144 = math.exp %143 : vector<8x8xf32>
      %cst_75 = arith.constant 0.000000e+00 : f32
      %145 = vector.broadcast %cst_75 : f32 to vector<8x8xf32>
      %146 = arith.select %24, %144, %145 : vector<8x8xi1>, vector<8x8xf32>
      %c0_76 = arith.constant 0 : index
      %c24_77 = arith.constant 24 : index
      %147 = vector.load %arg8[%c0_76, %c24_77] : memref<8x32xf32, #tpu.memory_space<vmem>>, vector<8x8xf32>
      %148 = arith.mulf %140, %147 : vector<8x8xf32>
      %cst_78 = arith.constant dense<0.000000e+00> : vector<8xf32>
      %149 = vector.multi_reduction <add>, %146, %cst_78 [1] : vector<8x8xf32> to vector<8xf32>
      %150 = vector.shape_cast %149 : vector<8xf32> to vector<8x1xf32>
      %151 = vector.broadcast %150 : vector<8x1xf32> to vector<8x8xf32>
      %152 = arith.addf %148, %151 : vector<8x8xf32>
      %c0_79 = arith.constant 0 : index
      %c24_80 = arith.constant 24 : index
      %153 = vector.load %arg8[%c0_79, %c24_80] : memref<8x32xf32, #tpu.memory_space<vmem>>, vector<8x8xf32>
      tpu.vector_store %arg8[%c0_79, %c24_80], %152 {strides = array<i32>} : memref<8x32xf32, #tpu.memory_space<vmem>>, vector<8x8xf32>,
      %c0_81 = arith.constant 0 : index
      %c24_82 = arith.constant 24 : index
      %154 = vector.load %arg9[%c0_81, %c24_82] : memref<8x32xf32, #tpu.memory_space<vmem>>, vector<8x8xf32>
      %155 = arith.mulf %140, %154 : vector<8x8xf32>
      %156 = vector.extract_strided_slice %17 {offsets = [0, 24], sizes = [8, 8], strides = [1, 1]} : vector<8x32xf32> to vector<8x8xf32>
      %cst_83 = arith.constant dense<0.000000e+00> : vector<8x8xf32>
      %157 = tpu.matmul %146, %156, %cst_83 {dimension_numbers = #tpu.dot_dimension_numbers<[1], [0], [0], [1], [0, 0, 1, 1], [], []>} : vector<8x8xf32>, vector<8x8xf32>, vector<8x8xf32> -> vector<8x8xf32>
      %158 = arith.addf %155, %157 : vector<8x8xf32>
      %c0_84 = arith.constant 0 : index
      %c24_85 = arith.constant 24 : index
      %159 = vector.load %arg9[%c0_84, %c24_85] : memref<8x32xf32, #tpu.memory_space<vmem>>, vector<8x8xf32>
      tpu.vector_store %arg9[%c0_84, %c24_85], %158 {strides = array<i32>} : memref<8x32xf32, #tpu.memory_space<vmem>>, vector<8x8xf32>,
      %c0_86 = arith.constant 0 : index
      %c24_87 = arith.constant 24 : index
      %160 = vector.load %arg7[%c0_86, %c24_87] : memref<8x32xf32, #tpu.memory_space<vmem>>, vector<8x8xf32>
      tpu.vector_store %arg7[%c0_86, %c24_87], %138 {strides = array<i32>} : memref<8x32xf32, #tpu.memory_space<vmem>>, vector<8x8xf32>,
    } else {
    }
    %c0_i32_3 = arith.constant 0 : i32
    %9 = arith.cmpi eq, %arg2, %c0_i32_3 : i32
    %10 = arith.extui %9 : i1 to i32
    %c0_i32_4 = arith.constant 0 : i32
    %11 = arith.cmpi ne, %10, %c0_i32_4 : i32
    scf.if %11 {
      %c0 = arith.constant 0 : index
      %c0_5 = arith.constant 0 : index
      %12 = vector.load %arg8[%c0, %c0_5] : memref<8x32xf32, #tpu.memory_space<vmem>>, vector<8x32xf32>
      %13 = tpu.reciprocal %12 {approx = true} : vector<8x32xf32> -> vector<8x32xf32>
      %14 = arith.mulf %12, %13 : vector<8x32xf32>
      %cst = arith.constant 2.000000e+00 : f32
      %15 = vector.broadcast %cst : f32 to vector<8x32xf32>
      %16 = arith.subf %15, %14 : vector<8x32xf32>
      %17 = arith.mulf %13, %16 : vector<8x32xf32>
      %c0_6 = arith.constant 0 : index
      %c0_7 = arith.constant 0 : index
      %18 = vector.load %arg9[%c0_6, %c0_7] : memref<8x32xf32, #tpu.memory_space<vmem>>, vector<8x32xf32>
      %19 = arith.mulf %18, %17 : vector<8x32xf32>
      %c0_8 = arith.constant 0 : index
      %c0_9 = arith.constant 0 : index
      %c0_10 = arith.constant 0 : index
      %20 = vector.load %arg6[%c0_8, %c0_9, %c0_10] : memref<1x8x32xf32, #tpu.memory_space<vmem>>, vector<1x8x32xf32>
      %21 = vector.shape_cast %20 : vector<1x8x32xf32> to vector<8x32xf32>
      %22 = vector.shape_cast %19 : vector<8x32xf32> to vector<1x8x32xf32>
      tpu.vector_store %arg6[%c0_8, %c0_9, %c0_10], %22 {strides = array<i32>} : memref<1x8x32xf32, #tpu.memory_space<vmem>>, vector<1x8x32xf32>,
    } else {
    }
    return
  }
  func.func @transform_0(%arg0: i32, %arg1: i32, %arg2: i32) -> (i32, i32, i32, i32) {
    %c0_i32 = arith.constant 0 : i32
    %c0_i32_0 = arith.constant 0 : i32
    %c0_i32_1 = arith.constant 0 : i32
    return %c0_i32, %arg0, %arg1, %c0_i32_0 : i32, i32, i32, i32
  }
  func.func @transform_1(%arg0: i32, %arg1: i32, %arg2: i32) -> (i32, i32, i32, i32) {
    %c1_i32 = arith.constant 1 : i32
    %c0_i32 = arith.constant 0 : i32
    %c0_i32_0 = arith.constant 0 : i32
    return %c1_i32, %arg0, %arg2, %c0_i32 : i32, i32, i32, i32
  }
  func.func @transform_2(%arg0: i32, %arg1: i32, %arg2: i32) -> (i32, i32, i32, i32) {
    %c2_i32 = arith.constant 2 : i32
    %c0_i32 = arith.constant 0 : i32
    %c0_i32_0 = arith.constant 0 : i32
    return %c2_i32, %arg0, %arg2, %c0_i32 : i32, i32, i32, i32
  }
  func.func @transform_3(%arg0: i32, %arg1: i32, %arg2: i32) -> (i32, i32, i32) {
    %c0_i32 = arith.constant 0 : i32
    %c0_i32_0 = arith.constant 0 : i32
    return %arg0, %arg1, %c0_i32 : i32, i32, i32
  }
}

module attributes {stable_mosaic.version = 11 : i64} {
  func.func @_linear_kernel(%arg0: i32, %arg1: i32, %arg2: i32, %arg3: i32, %arg4: memref<16x32xf32, #tpu.memory_space<vmem>>, %arg5: memref<1x32x32xf32, #tpu.memory_space<vmem>>, %arg6: memref<1x1x32xf32, #tpu.memory_space<vmem>>, %arg7: memref<1x16x32xf32, #tpu.memory_space<vmem>>, %arg8: memref<16x32xf32, #tpu.memory_space<vmem>>) attributes {dimension_semantics = [#tpu.dimension_semantics<parallel>, #tpu.dimension_semantics<parallel>, #tpu.dimension_semantics<parallel>, #tpu.dimension_semantics<arbitrary>], iteration_bounds = array<i64: 1, 1, 1, 1>, scalar_prefetch = 0 : i64, scratch_operands = 1 : i64, tpu.core_type = #tpu.core_type<tc>, window_params = [{transform_indices = @transform_0, window_bounds = array<i64: 16, 32>}, {transform_indices = @transform_1, window_bounds = array<i64: 1, 32, 32>}, {transform_indices = @transform_2, window_bounds = array<i64: 1, 1, 32>}, {transform_indices = @transform_3, window_bounds = array<i64: 1, 16, 32>}]} {
    %c0_i32 = arith.constant 0 : i32
    %0 = arith.cmpi eq, %arg3, %c0_i32 : i32
    %1 = arith.extui %0 : i1 to i32
    %c0_i32_0 = arith.constant 0 : i32
    %2 = arith.cmpi ne, %1, %c0_i32_0 : i32
    scf.if %2 {
      %cst_11 = arith.constant 0.000000e+00 : f32
      %13 = vector.broadcast %cst_11 : f32 to vector<16x32xf32>
      %c0_12 = arith.constant 0 : index
      %c0_13 = arith.constant 0 : index
      %14 = vector.load %arg8[%c0_12, %c0_13] : memref<16x32xf32, #tpu.memory_space<vmem>>, vector<16x32xf32>
      tpu.vector_store %arg8[%c0_12, %c0_13], %13 {strides = array<i32>} : memref<16x32xf32, #tpu.memory_space<vmem>>, vector<16x32xf32>,
    } else {
    }
    %c0 = arith.constant 0 : index
    %c0_1 = arith.constant 0 : index
    %3 = vector.load %arg8[%c0, %c0_1] : memref<16x32xf32, #tpu.memory_space<vmem>>, vector<16x32xf32>
    %c0_2 = arith.constant 0 : index
    %c0_3 = arith.constant 0 : index
    %4 = vector.load %arg4[%c0_2, %c0_3] : memref<16x32xf32, #tpu.memory_space<vmem>>, vector<16x32xf32>
    %c0_4 = arith.constant 0 : index
    %c0_5 = arith.constant 0 : index
    %c0_6 = arith.constant 0 : index
    %5 = vector.load %arg5[%c0_4, %c0_5, %c0_6] : memref<1x32x32xf32, #tpu.memory_space<vmem>>, vector<1x32x32xf32>
    %6 = vector.shape_cast %5 : vector<1x32x32xf32> to vector<32x32xf32>
    %cst = arith.constant dense<0.000000e+00> : vector<16x32xf32>
    %7 = tpu.matmul %4, %6, %cst {dimension_numbers = #tpu.dot_dimension_numbers<[1], [1], [0], [0], [0, 0, 1, 0], [], []>} : vector<16x32xf32>, vector<32x32xf32>, vector<16x32xf32> -> vector<16x32xf32>
    %8 = arith.addf %3, %7 : vector<16x32xf32>
    %c0_7 = arith.constant 0 : index
    %c0_8 = arith.constant 0 : index
    %9 = vector.load %arg8[%c0_7, %c0_8] : memref<16x32xf32, #tpu.memory_space<vmem>>, vector<16x32xf32>
    tpu.vector_store %arg8[%c0_7, %c0_8], %8 {strides = array<i32>} : memref<16x32xf32, #tpu.memory_space<vmem>>, vector<16x32xf32>,
    %c0_i32_9 = arith.constant 0 : i32
    %10 = arith.cmpi eq, %arg3, %c0_i32_9 : i32
    %11 = arith.extui %10 : i1 to i32
    %c0_i32_10 = arith.constant 0 : i32
    %12 = arith.cmpi ne, %11, %c0_i32_10 : i32
    scf.if %12 {
      %c0_11 = arith.constant 0 : index
      %c0_12 = arith.constant 0 : index
      %13 = vector.load %arg8[%c0_11, %c0_12] : memref<16x32xf32, #tpu.memory_space<vmem>>, vector<16x32xf32>
      %c0_13 = arith.constant 0 : index
      %c0_14 = arith.constant 0 : index
      %c0_15 = arith.constant 0 : index
      %14 = vector.load %arg6[%c0_13, %c0_14, %c0_15] : memref<1x1x32xf32, #tpu.memory_space<vmem>>, vector<1x1x32xf32>
      %15 = vector.shape_cast %14 : vector<1x1x32xf32> to vector<1x32xf32>
      %16 = vector.broadcast %15 : vector<1x32xf32> to vector<16x32xf32>
      %17 = arith.addf %13, %16 : vector<16x32xf32>
      %c0_16 = arith.constant 0 : index
      %c0_17 = arith.constant 0 : index
      %c0_18 = arith.constant 0 : index
      %18 = vector.load %arg7[%c0_16, %c0_17, %c0_18] : memref<1x16x32xf32, #tpu.memory_space<vmem>>, vector<1x16x32xf32>
      %19 = vector.shape_cast %18 : vector<1x16x32xf32> to vector<16x32xf32>
      %20 = vector.shape_cast %17 : vector<16x32xf32> to vector<1x16x32xf32>
      tpu.vector_store %arg7[%c0_16, %c0_17, %c0_18], %20 {strides = array<i32>} : memref<1x16x32xf32, #tpu.memory_space<vmem>>, vector<1x16x32xf32>,
    } else {
    }
    return
  }
  func.func @transform_0(%arg0: i32, %arg1: i32, %arg2: i32, %arg3: i32) -> (i32, i32) {
    %c0_i32 = arith.constant 0 : i32
    return %arg1, %arg3 : i32, i32
  }
  func.func @transform_1(%arg0: i32, %arg1: i32, %arg2: i32, %arg3: i32) -> (i32, i32, i32) {
    %c0_i32 = arith.constant 0 : i32
    return %arg0, %arg2, %arg3 : i32, i32, i32
  }
  func.func @transform_2(%arg0: i32, %arg1: i32, %arg2: i32, %arg3: i32) -> (i32, i32, i32) {
    %c0_i32 = arith.constant 0 : i32
    %c0_i32_0 = arith.constant 0 : i32
    return %arg0, %c0_i32, %arg2 : i32, i32, i32
  }
  func.func @transform_3(%arg0: i32, %arg1: i32, %arg2: i32, %arg3: i32) -> (i32, i32, i32) {
    %c0_i32 = arith.constant 0 : i32
    return %arg0, %arg1, %arg2 : i32, i32, i32
  }
}

</mosaic_0001>

<llo_original>
// kernel: _lambda_.5
$region0: #{_lambda_.5}
  #allocation0 [shape = 'u32[]', space=smem, size = 0x4, offset = 0x4, fixed_abs, tag = 'smem constant byte address 0x4 - core index']
  #allocation1 [shape = 'u32[72,128]{1,0:T(1,128)}', space=vmem, size = 0x9000, scoped, tag = 'internal scratch']
  #allocation2 [shape = 'f32[16,32]{1,0:T(8,128)}', space=vmem, size = 0x2000, scoped, tag = 'scratch operand']
  %s0 = inlined_call_operand.vmem [shape: f32[16,32], index: 0, kind: input, shape index: {}]
  %s1 = inlined_call_operand.vmem [shape: f32[1,32,32], index: 1, kind: input, shape index: {}]
  %s2 = inlined_call_operand.vmem [shape: f32[1,1,32], index: 2, kind: input, shape index: {}]
  %s3 = inlined_call_operand.hbm [shape: f32[1,16,32], index: 3, kind: output, shape index: {}]
  %s4 = sld [smem:[#allocation0]]
  $region30: #{_lambda_.5} parent=0
    _
  %s6 = ssub.s32 1, %s4
  %s7 = scalar_select 0, %s6, %s4
  $region1: #{_lambda_.5} parent=0
    #allocation3 [shape = 'u8[8192]{0}', space=vmem, size = 0x2000, scoped, tag = 'output window, operand 0, single buffered']
    #allocation4 [shape = 's32[1]{0}', space=sflag, size = 0x4, scoped, tag = 'scoped memory for _lambda_.5']
    %8 = vsyncpa [#allocation4], 0
    // Predicated region
    $region2: #{_lambda_.5} parent=1 // pred_check
      _
    $region3: #{_lambda_.5} parent=1 // pred_check_branch
      %10 = sbr.rel (0) target = $region5
    $region4: #{_lambda_.5} parent=1 // pred_region
      _
    $region5: #{_lambda_.5} parent=1 // pred_fallthru
      _
    // Predicated region
    $region6: #{_lambda_.5} parent=1 // pred_check
      _
    $region7: #{_lambda_.5} parent=1 // pred_check_branch
      %12 = sbr.rel (0) target = $region9
    $region8: #{_lambda_.5} parent=1 // pred_region
      _
    $region9: #{_lambda_.5} parent=1 // pred_fallthru
      _
    // Predicated region
    $region10: #{_lambda_.5} parent=1 // pred_check
      _
    $region11: #{_lambda_.5} parent=1 // pred_check_branch
      %14 = sbr.rel (0) target = $region13
    $region12: #{_lambda_.5} parent=1 // pred_region
      _
    $region13: #{_lambda_.5} parent=1 // pred_fallthru
      _
    %p15 = scmp.eq.s32.totalorder 0, 0
    // Predicated region
    $region14: #{_lambda_.5} parent=1 // pred_check
      %p16 = pneg %p15
    $region15: #{_lambda_.5} parent=1 // pred_check_branch
      %18 = sbr.rel (%p16) target = $region17
    $region16: #{_lambda_.5} parent=1 // pred_region
      %vm19 = vcmask 261120
      %20 = vst.msk [vmem:[#allocation2] sm:$0xff] %vm19, 0.0
      %21 = vst.msk [vmem:[#allocation2 + $0x8] sm:$0xff] %vm19, 0.0
    $region17: #{_lambda_.5} parent=1 // pred_fallthru
      _
    %v22 = vld [vmem:[#allocation2] sm:$0xff]
    %v23 = vld [vmem:[#allocation2 + $0x8] sm:$0xff]
    %v24 = vld [vmem:[%s0] sm:$0xff]
    %v25 = vld [vmem:[%s0 + $0x8] sm:$0xff]
    %v26 = vld [vmem:[%s1] sm:$0xff]
    %v27 = vld [vmem:[%s1 + $0x8] sm:$0xff]
    %v28 = vld [vmem:[%s1 + $0x10] sm:$0xff]
    %v29 = vld [vmem:[%s1 + $0x18] sm:$0xff]
    %vm30 = vcmask 261120
    %v32 = vsel %vm30, %v24, 0
    %v35 = vsel %vm30, %v25, 0
    %v38 = vsel %vm30, %v26, 0
    %v41 = vsel %vm30, %v27, 0
    %v44 = vsel %vm30, %v28, 0
    %v47 = vsel %vm30, %v29, 0
    %49 = vmatpush.xpose.msra.mxu0 0.0
    %50 = vmatpush.xpose.msra.mxu0 0.0
    %51 = vmatpush.xpose.msra.mxu0 0.0
    %52 = vmatpush.xpose.msra.mxu0 0.0
    %53 = vmatpush.xpose.msra.mxu0 0.0
    %54 = vmatpush.xpose.msra.mxu0 0.0
    %55 = vmatpush.xpose.msra.mxu0 0.0
    %56 = vmatpush.xpose.msra.mxu0 0.0
    %57 = vmatpush.xpose.msra.mxu0 0.0
    %58 = vmatpush.xpose.msra.mxu0 0.0
    %59 = vmatpush.xpose.msra.mxu0 0.0
    %60 = vmatpush.xpose.msra.mxu0 0.0
    %61 = vmatpush.xpose.msra.mxu0 %v47
    %62 = vmatpush.xpose.msra.mxu0 %v44
    %63 = vmatpush.xpose.msra.mxu0 %v41
    %64 = vmatpush.xpose.msra.mxu0 %v38
    %65 = vmatmul.f32.gmra.mxu0 %v32
    %v66 = vpop.f32.mrf.mxu0
    %v67 = vadd.f32 0.0, %v66
    %68 = vmatmul.f32.gmra.mxu0 %v35
    %v69 = vpop.f32.mrf.mxu0
    %v70 = vadd.f32 0.0, %v69
    %71 = vdwg.mxu0
    %v72 = vadd.f32 %v22, %v67
    %v73 = vadd.f32 %v23, %v70
    %74 = vst.msk [vmem:[#allocation2] sm:$0xff] %vm30, %v72
    %75 = vst.msk [vmem:[#allocation2 + $0x8] sm:$0xff] %vm30, %v73
    // Predicated region
    $region18: #{_lambda_.5} parent=1 // pred_check
      %p76 = pneg %p15
    $region19: #{_lambda_.5} parent=1 // pred_check_branch
      %78 = sbr.rel (%p76) target = $region21
    $region20: #{_lambda_.5} parent=1 // pred_region
      %v79 = vld [vmem:[#allocation2] sm:$0xff]
      %v80 = vld [vmem:[#allocation2 + $0x8] sm:$0xff]
      %v81 = vld [vmem:[%s2] sm:$0x1]
      %v83 = vperm.slane %v81, 0
      %v85 = vadd.f32 %v79, %v83
      %v86 = vadd.f32 %v80, %v83
      %87 = vst.msk [vmem:[#allocation3] sm:$0xff] %vm30, %v85
      %88 = vst.msk [vmem:[#allocation3 + $0x8] sm:$0xff] %vm30, %v86
    $region21: #{_lambda_.5} parent=1 // pred_fallthru
      _
    // Predicated region
    $region22: #{_lambda_.5} parent=1 // pred_check
      _
    $region23: #{_lambda_.5} parent=1 // pred_check_branch
      %90 = sbr.rel (0) target = $region25
    $region24: #{_lambda_.5} parent=1 // pred_region
      %92 = vsyncadd [#allocation4], 0
      %s93 = sshll.u32 [#allocation3], 4
      %s94 = int_to_ptr.vmem [resolvable:$true] %s93
      %s95 = sshll.u32 %s3, 4
      %s96 = int_to_ptr.hbm [resolvable:$true] %s95
      %101 = dma.vmem_to_hbm [thread:$0]  %s94, 256, %s96, [#allocation4], 128, 128, 8
    $region25: #{_lambda_.5} parent=1 // pred_fallthru
      _
    // Predicated region
    $region26: #{_lambda_.5} parent=1 // pred_check
      _
    $region27: #{_lambda_.5} parent=1 // pred_check_branch
      %103 = sbr.rel (0) target = $region29
    $region28: #{_lambda_.5} parent=1 // pred_region
      %105 = dma.done [#allocation4], 256
    $region29: #{_lambda_.5} parent=1 // pred_fallthru
      _
    %106 = vsyncpa [#allocation4], 1

// kernel: _lambda_.3
$region0: #{_lambda_.3}
  #allocation0 [shape = 'u32[]', space=smem, size = 0x4, offset = 0x4, fixed_abs, tag = 'smem constant byte address 0x4 - core index']
  #allocation1 [shape = 'u32[72,128]{1,0:T(1,128)}', space=vmem, size = 0x9000, scoped, tag = 'internal scratch']
  #allocation2 [shape = 'f32[16,32]{1,0:T(8,128)}', space=vmem, size = 0x2000, scoped, tag = 'scratch operand']
  %s0 = inlined_call_operand.vmem [shape: f32[16,32], index: 0, kind: input, shape index: {}]
  %s1 = inlined_call_operand.vmem [shape: f32[3,32,32], index: 1, kind: input, shape index: {}]
  %s2 = inlined_call_operand.vmem [shape: f32[3,1,32], index: 2, kind: input, shape index: {}]
  %s3 = inlined_call_operand.vmem [shape: f32[3,16,32], index: 3, kind: output, shape index: {}]
  %s4 = sld [smem:[#allocation0]]
  $region53: #{_lambda_.3} parent=0
    _
  %s6 = ssub.s32 1, %s4
  %s7 = scalar_select 0, %s6, %s4
  loop: start=0, step=1, limit=5
  $region2: #{_lambda_.3} parent=0 // loop_pre_header
    _
  $region3: #{_lambda_.3} parent=0 // loop_header
    %s9 = sphi 0, %s13
    %p10 = scmp.ge.s32.totalorder %s9, 5
    %s16 = sphi 0, %s42
    %s17 = sphi 0, %s38
    %s18 = sphi 0, %s34
    %s19 = sphi 0, %s30
    %s20 = sphi 0, %s16
    %s21 = sphi 0, %s17
    %s22 = sphi 0, %s18
    %s23 = sphi 0, %s19
    %s24 = sphi 0, %s20
    %s25 = sphi 0, %s21
    %s26 = sphi 0, %s22
    %s27 = sphi 0, %s23
    %s47 = sphi 0, %s49
    %s50 = sphi 0, %s47
    %s51 = sphi 0, %s50
    %s67 = sphi 0, %s51
    %s77 = sphi 0, %s79
    %s80 = sphi 0, %s77
    %s81 = sphi 0, %s80
    %s97 = sphi 0, %s81
    %s105 = sphi 0, %s107
    %s108 = sphi 0, %s105
    %s109 = sphi 0, %s108
    %s125 = sphi 0, %s109
    %s135 = sphi 0, %s137
    %s138 = sphi 0, %s135
    %s139 = sphi 0, %s138
    %s155 = sphi 0, %s139
  $region4: #{_lambda_.3} parent=0 // loop_header_branch
    %12 = sbr.rel (%p10) target = $region8
  $region5: #{_lambda_.3} parent=0 // loop_body
    %s14 = ssub.s32 %s9, 1
    %s15 = ssub.s32 %s9, 2
    %s28 = sadd.s32 1, %s19
    %p29 = scmp.ge.s32.totalorder %s28, 1
    %s30 = scalar_select %p29, 0, %s28
    %s31 = sadd.s32 1, %s18
    %s32 = scalar_select %p29, %s31, %s18
    %p33 = scmp.ge.s32.totalorder %s32, 1
    %s34 = scalar_select %p33, 0, %s32
    %s35 = sadd.s32 1, %s17
    %s36 = scalar_select %p33, %s35, %s17
    %p37 = scmp.ge.s32.totalorder %s36, 1
    %s38 = scalar_select %p37, 0, %s36
    %s39 = sadd.s32 1, %s16
    %s40 = scalar_select %p37, %s39, %s16
    %p41 = scmp.ge.s32.totalorder %s40, 3
    %s42 = scalar_select %p41, 0, %s40
    %s43 = ssub.s32 %s17, %s38
    %s44 = ssub.s32 %s19, %s30
    %s45 = sor.u32 %s43, %s44
    %p46 = scmp.eq.s32.totalorder %s45, 0
    %s48 = sadd.s32 %s47, 1
    %s49 = scalar_select %p46, %s47, %s48
    %p52 = pneg %p46
    %p53 = scmp.eq.s32.totalorder %s9, 2
    %p54 = por %p52, %p53
    %p55 = scmp.ne.s32.totalorder %s47, %s50
    %p56 = scmp.eq.s32.totalorder %s9, 0
    %p57 = por %p55, %p56
    %p58 = scmp.ne.s32.totalorder %s47, %s50
    %p59 = scmp.eq.s32.totalorder %s14, 2
    %p60 = por %p58, %p59
    %p61 = scmp.ne.s32.totalorder %s50, %s51
    %p62 = scmp.eq.s32.totalorder %s14, 0
    %p63 = por %p61, %p62
    %p64 = scmp.ne.s32.totalorder %s50, %s51
    %p65 = scmp.eq.s32.totalorder %s15, 2
    %p66 = por %p64, %p65
    %p68 = scmp.ne.s32.totalorder %s51, %s67
    %p69 = scmp.eq.s32.totalorder %s15, 0
    %p70 = por %p68, %p69
    %s71 = ssub.s32 %s16, %s42
    %s72 = ssub.s32 %s18, %s34
    %s73 = sor.u32 %s71, %s72
    %s74 = ssub.s32 %s19, %s30
    %s75 = sor.u32 %s73, %s74
    %p76 = scmp.eq.s32.totalorder %s75, 0
    %s78 = sadd.s32 %s77, 1
    %s79 = scalar_select %p76, %s77, %s78
    %p82 = pneg %p76
    %p83 = scmp.eq.s32.totalorder %s9, 2
    %p84 = por %p82, %p83
    %p85 = scmp.ne.s32.totalorder %s77, %s80
    %p86 = scmp.eq.s32.totalorder %s9, 0
    %p87 = por %p85, %p86
    %p88 = scmp.ne.s32.totalorder %s77, %s80
    %p89 = scmp.eq.s32.totalorder %s14, 2
    %p90 = por %p88, %p89
    %p91 = scmp.ne.s32.totalorder %s80, %s81
    %p92 = scmp.eq.s32.totalorder %s14, 0
    %p93 = por %p91, %p92
    %p94 = scmp.ne.s32.totalorder %s80, %s81
    %p95 = scmp.eq.s32.totalorder %s15, 2
    %p96 = por %p94, %p95
    %p98 = scmp.ne.s32.totalorder %s81, %s97
    %p99 = scmp.eq.s32.totalorder %s15, 0
    %p100 = por %p98, %p99
    %s101 = ssub.s32 %s16, %s42
    %s102 = ssub.s32 %s18, %s34
    %s103 = sor.u32 %s101, %s102
    %p104 = scmp.eq.s32.totalorder %s103, 0
    %s106 = sadd.s32 %s105, 1
    %s107 = scalar_select %p104, %s105, %s106
    %p110 = pneg %p104
    %p111 = scmp.eq.s32.totalorder %s9, 2
    %p112 = por %p110, %p111
    %p113 = scmp.ne.s32.totalorder %s105, %s108
    %p114 = scmp.eq.s32.totalorder %s9, 0
    %p115 = por %p113, %p114
    %p116 = scmp.ne.s32.totalorder %s105, %s108
    %p117 = scmp.eq.s32.totalorder %s14, 2
    %p118 = por %p116, %p117
    %p119 = scmp.ne.s32.totalorder %s108, %s109
    %p120 = scmp.eq.s32.totalorder %s14, 0
    %p121 = por %p119, %p120
    %p122 = scmp.ne.s32.totalorder %s108, %s109
    %p123 = scmp.eq.s32.totalorder %s15, 2
    %p124 = por %p122, %p123
    %p126 = scmp.ne.s32.totalorder %s109, %s125
    %p127 = scmp.eq.s32.totalorder %s15, 0
    %p128 = por %p126, %p127
    %s129 = ssub.s32 %s16, %s42
    %s130 = ssub.s32 %s17, %s38
    %s131 = sor.u32 %s129, %s130
    %s132 = ssub.s32 %s18, %s34
    %s133 = sor.u32 %s131, %s132
    %p134 = scmp.eq.s32.totalorder %s133, 0
    %s136 = sadd.s32 %s135, 1
    %s137 = scalar_select %p134, %s135, %s136
    %p140 = pneg %p134
    %p141 = scmp.eq.s32.totalorder %s9, 2
    %p142 = por %p140, %p141
    %p143 = scmp.ne.s32.totalorder %s135, %s138
    %p144 = scmp.eq.s32.totalorder %s9, 0
    %p145 = por %p143, %p144
    %p146 = scmp.ne.s32.totalorder %s135, %s138
    %p147 = scmp.eq.s32.totalorder %s14, 2
    %p148 = por %p146, %p147
    %p149 = scmp.ne.s32.totalorder %s138, %s139
    %p150 = scmp.eq.s32.totalorder %s14, 0
    %p151 = por %p149, %p150
    %p152 = scmp.ne.s32.totalorder %s138, %s139
    %p153 = scmp.eq.s32.totalorder %s15, 2
    %p154 = por %p152, %p153
    %p156 = scmp.ne.s32.totalorder %s139, %s155
    %p157 = scmp.eq.s32.totalorder %s15, 0
    %p158 = por %p156, %p157
    %p159 = scmp.le.s32.totalorder 1, %s9
    %p160 = scmp.lt.s32.totalorder %s9, 4
    %p161 = pnand %p159, %p160
    %p162 = pneg %p161
    // Predicated region
    $region9: #{_lambda_.3} parent=5 // pred_check
      _
    $region10: #{_lambda_.3} parent=5 // pred_check_branch
      %164 = sbr.rel (%p161) target = $region12
    $region11: #{_lambda_.3} parent=5 // pred_region
      %s165 = ssub.s32 %s9, 1
      // Predicated region
      $region13: #{_lambda_.3} parent=11 // pred_check
        %p166 = pneg %p63
      $region14: #{_lambda_.3} parent=11 // pred_check_branch
        %168 = sbr.rel (%p166) target = $region16
      $region15: #{_lambda_.3} parent=11 // pred_region
        %s169 = smul.u32 2, %s21
        %p170 = scmp.lt.s32.totalorder %s169, 1
        %s171 = scalar_select %p170, %s169, 1
        %p172 = scmp.lt.s32.totalorder %s23, 0
        %s173 = scalar_select %p172, %s23, 0
        %s174 = sadd.s32 %s173, %s171
        %s175 = smul.addr %s174, 8
        %s176 = scalar_lea.vmem %s0, %s175
        %s177 = smul.u32 2, %s21
      $region16: #{_lambda_.3} parent=11 // pred_fallthru
        _
    $region12: #{_lambda_.3} parent=5 // pred_fallthru
      _
    %p178 = scmp.lt.s32.totalorder %s9, 3
    // Predicated region
    $region17: #{_lambda_.3} parent=5 // pred_check
      %p179 = pneg %p178
    $region18: #{_lambda_.3} parent=5 // pred_check_branch
      %181 = sbr.rel (%p179) target = $region20
    $region19: #{_lambda_.3} parent=5 // pred_region
      // Predicated region
      $region21: #{_lambda_.3} parent=19 // pred_check
        %p182 = pneg %p87
      $region22: #{_lambda_.3} parent=19 // pred_check_branch
        %184 = sbr.rel (%p182) target = $region24
      $region23: #{_lambda_.3} parent=19 // pred_region
        %s185 = smul.u32 4, %s18
        %p186 = scmp.lt.s32.totalorder %s16, 2
        %s187 = scalar_select %p186, %s16, 2
        %p188 = scmp.lt.s32.totalorder %s185, 3
        %s189 = scalar_select %p188, %s185, 3
        %p190 = scmp.lt.s32.totalorder %s19, 0
        %s191 = scalar_select %p190, %s19, 0
        %s192 = sadd.s32 %s191, %s189
        %s193 = smul.addr %s187, 4
        %s194 = sadd.s32 %s192, %s193
        %s195 = smul.addr %s194, 8
        %s196 = scalar_lea.vmem %s1, %s195
        %s197 = smul.u32 4, %s18
      $region24: #{_lambda_.3} parent=19 // pred_fallthru
        _
      // Predicated region
      $region25: #{_lambda_.3} parent=19 // pred_check
        %p198 = pneg %p115
      $region26: #{_lambda_.3} parent=19 // pred_check_branch
        %200 = sbr.rel (%p198) target = $region28
      $region27: #{_lambda_.3} parent=19 // pred_region
        %p201 = scmp.lt.s32.totalorder %s16, 2
        %s202 = scalar_select %p201, %s16, 2
        %p203 = scmp.lt.s32.totalorder %s18, 0
        %s204 = scalar_select %p203, %s18, 0
        %s205 = sadd.s32 %s204, %s202
        %s206 = scalar_lea.vmem %s2, %s205
      $region28: #{_lambda_.3} parent=19 // pred_fallthru
        _
    $region20: #{_lambda_.3} parent=5 // pred_fallthru
      _
    %p207 = scmp.le.s32.totalorder 1, %s9
    %p208 = scmp.lt.s32.totalorder %s9, 4
    %p209 = pnand %p207, %p208
    %p210 = pneg %p209
    // Predicated region
    $region29: #{_lambda_.3} parent=5 // pred_check
      _
    $region30: #{_lambda_.3} parent=5 // pred_check_branch
      %212 = sbr.rel (%p209) target = $region32
    $region31: #{_lambda_.3} parent=5 // pred_region
      %s213 = ssub.s32 %s9, 1
      %s214 = smul.u32 2, %s21
      %p215 = scmp.lt.s32.totalorder %s214, 1
      %s216 = scalar_select %p215, %s214, 1
      %p217 = scmp.lt.s32.totalorder %s23, 0
      %s218 = scalar_select %p217, %s23, 0
      %s219 = sadd.s32 %s218, %s216
      %s220 = smul.addr %s219, 8
      %s221 = scalar_lea.vmem %s0, %s220
      %p222 = pneg %p63
      %p223 = pneg %p60
      %s224 = smul.u32 4, %s22
      %p225 = scmp.lt.s32.totalorder %s20, 2
      %s226 = scalar_select %p225, %s20, 2
      %p227 = scmp.lt.s32.totalorder %s224, 3
      %s228 = scalar_select %p227, %s224, 3
      %p229 = scmp.lt.s32.totalorder %s23, 0
      %s230 = scalar_select %p229, %s23, 0
      %s231 = sadd.s32 %s230, %s228
      %s232 = smul.addr %s226, 4
      %s233 = sadd.s32 %s231, %s232
      %s234 = smul.addr %s233, 8
      %s235 = scalar_lea.vmem %s1, %s234
      %p236 = pneg %p93
      %p237 = pneg %p90
      %p238 = scmp.lt.s32.totalorder %s20, 2
      %s239 = scalar_select %p238, %s20, 2
      %p240 = scmp.lt.s32.totalorder %s22, 0
      %s241 = scalar_select %p240, %s22, 0
      %s242 = sadd.s32 %s241, %s239
      %s243 = scalar_lea.vmem %s2, %s242
      %p244 = pneg %p121
      %p245 = pneg %p118
      %p246 = pneg %p151
      %p247 = pneg %p148
      %s248 = smul.u32 2, %s21
      %p249 = scmp.lt.s32.totalorder %s20, 2
      %s250 = scalar_select %p249, %s20, 2
      %p251 = scmp.lt.s32.totalorder %s248, 1
      %s252 = scalar_select %p251, %s248, 1
      %p253 = scmp.lt.s32.totalorder %s22, 0
      %s254 = scalar_select %p253, %s22, 0
      %s255 = sadd.s32 %s254, %s252
      %s256 = smul.addr %s250, 2
      %s257 = sadd.s32 %s255, %s256
      %s258 = smul.addr %s257, 8
      %s259 = scalar_lea.vmem %s3, %s258
      %s260 = smul.u32 2, %s21
      %p261 = scmp.lt.s32.totalorder %s260, 1
      %s262 = scalar_select %p261, %s260, 1
      %p263 = scmp.lt.s32.totalorder %s23, 0
      %s264 = scalar_select %p263, %s23, 0
      %s265 = sadd.s32 %s264, %s262
      %s266 = smul.addr %s265, 8
      %s267 = scalar_lea.vmem %s0, %s266
      %s268 = smul.u32 2, %s21
      %s269 = smul.u32 4, %s22
      %p270 = scmp.lt.s32.totalorder %s20, 2
      %s271 = scalar_select %p270, %s20, 2
      %p272 = scmp.lt.s32.totalorder %s269, 3
      %s273 = scalar_select %p272, %s269, 3
      %p274 = scmp.lt.s32.totalorder %s23, 0
      %s275 = scalar_select %p274, %s23, 0
      %s276 = sadd.s32 %s275, %s273
      %s277 = smul.addr %s271, 4
      %s278 = sadd.s32 %s276, %s277
      %s279 = smul.addr %s278, 8
      %s280 = scalar_lea.vmem %s1, %s279
      %s281 = smul.u32 4, %s22
      %p282 = scmp.lt.s32.totalorder %s20, 2
      %s283 = scalar_select %p282, %s20, 2
      %p284 = scmp.lt.s32.totalorder %s22, 0
      %s285 = scalar_select %p284, %s22, 0
      %s286 = sadd.s32 %s285, %s283
      %s287 = scalar_lea.vmem %s2, %s286
      %s288 = smul.u32 2, %s21
      %p289 = scmp.lt.s32.totalorder %s20, 2
      %s290 = scalar_select %p289, %s20, 2
      %p291 = scmp.lt.s32.totalorder %s288, 1
      %s292 = scalar_select %p291, %s288, 1
      %p293 = scmp.lt.s32.totalorder %s22, 0
      %s294 = scalar_select %p293, %s22, 0
      %s295 = sadd.s32 %s294, %s292
      %s296 = smul.addr %s290, 2
      %s297 = sadd.s32 %s295, %s296
      %s298 = smul.addr %s297, 8
      %s299 = scalar_lea.vmem %s3, %s298
      %s300 = smul.u32 2, %s21
      %p301 = scmp.eq.s32.totalorder %s23, 0
      // Predicated region
      $region33: #{_lambda_.3} parent=31 // pred_check
        %p302 = pneg %p301
      $region34: #{_lambda_.3} parent=31 // pred_check_branch
        %304 = sbr.rel (%p302) target = $region36
      $region35: #{_lambda_.3} parent=31 // pred_region
        %vm305 = vcmask 261120
        %306 = vst.msk [vmem:[#allocation2] sm:$0xff] %vm305, 0.0
        %307 = vst.msk [vmem:[#allocation2 + $0x8] sm:$0xff] %vm305, 0.0
      $region36: #{_lambda_.3} parent=31 // pred_fallthru
        _
      %v308 = vld [vmem:[#allocation2] sm:$0xff]
      %v309 = vld [vmem:[#allocation2 + $0x8] sm:$0xff]
      %v310 = vld [vmem:[%s267] sm:$0xff]
      %v311 = vld [vmem:[%s267 + $0x8] sm:$0xff]
      %v312 = vld [vmem:[%s280] sm:$0xff]
      %v313 = vld [vmem:[%s280 + $0x8] sm:$0xff]
      %v314 = vld [vmem:[%s280 + $0x10] sm:$0xff]
      %v315 = vld [vmem:[%s280 + $0x18] sm:$0xff]
      %vm316 = vcmask 261120
      %v318 = vsel %vm316, %v310, 0
      %v321 = vsel %vm316, %v311, 0
      %v324 = vsel %vm316, %v312, 0
      %v327 = vsel %vm316, %v313, 0
      %v330 = vsel %vm316, %v314, 0
      %v333 = vsel %vm316, %v315, 0
      %335 = vmatpush.xpose.msra.mxu0 0.0
      %336 = vmatpush.xpose.msra.mxu0 0.0
      %337 = vmatpush.xpose.msra.mxu0 0.0
      %338 = vmatpush.xpose.msra.mxu0 0.0
      %339 = vmatpush.xpose.msra.mxu0 0.0
      %340 = vmatpush.xpose.msra.mxu0 0.0
      %341 = vmatpush.xpose.msra.mxu0 0.0
      %342 = vmatpush.xpose.msra.mxu0 0.0
      %343 = vmatpush.xpose.msra.mxu0 0.0
      %344 = vmatpush.xpose.msra.mxu0 0.0
      %345 = vmatpush.xpose.msra.mxu0 0.0
      %346 = vmatpush.xpose.msra.mxu0 0.0
      %347 = vmatpush.xpose.msra.mxu0 %v333
      %348 = vmatpush.xpose.msra.mxu0 %v330
      %349 = vmatpush.xpose.msra.mxu0 %v327
      %350 = vmatpush.xpose.msra.mxu0 %v324
      %351 = vmatmul.f32.gmra.mxu0 %v318
      %v352 = vpop.f32.mrf.mxu0
      %v353 = vadd.f32 0.0, %v352
      %354 = vmatmul.f32.gmra.mxu0 %v321
      %v355 = vpop.f32.mrf.mxu0
      %v356 = vadd.f32 0.0, %v355
      %357 = vdwg.mxu0
      %v358 = vadd.f32 %v308, %v353
      %v359 = vadd.f32 %v309, %v356
      %360 = vst.msk [vmem:[#allocation2] sm:$0xff] %vm316, %v358
      %361 = vst.msk [vmem:[#allocation2 + $0x8] sm:$0xff] %vm316, %v359
      // Predicated region
      $region37: #{_lambda_.3} parent=31 // pred_check
        %p362 = pneg %p301
      $region38: #{_lambda_.3} parent=31 // pred_check_branch
        %364 = sbr.rel (%p362) target = $region40
      $region39: #{_lambda_.3} parent=31 // pred_region
        %v365 = vld [vmem:[#allocation2] sm:$0xff]
        %v366 = vld [vmem:[#allocation2 + $0x8] sm:$0xff]
        %v367 = vld [vmem:[%s287] sm:$0x1]
        %v369 = vperm.slane %v367, 0
        %v371 = vadd.f32 %v365, %v369
        %v372 = vadd.f32 %v366, %v369
        %373 = vst.msk [vmem:[%s299] sm:$0xff] %vm316, %v371
        %374 = vst.msk [vmem:[%s299 + $0x8] sm:$0xff] %vm316, %v372
      $region40: #{_lambda_.3} parent=31 // pred_fallthru
        _
      %s375 = smul.u32 2, %s21
      %p376 = scmp.lt.s32.totalorder %s20, 2
      %s377 = scalar_select %p376, %s20, 2
      %p378 = scmp.lt.s32.totalorder %s375, 1
      %s379 = scalar_select %p378, %s375, 1
      %p380 = scmp.lt.s32.totalorder %s22, 0
      %s381 = scalar_select %p380, %s22, 0
      %s382 = sadd.s32 %s381, %s379
      %s383 = smul.addr %s377, 2
      %s384 = sadd.s32 %s382, %s383
      %s385 = smul.addr %s384, 8
      %s386 = scalar_lea.vmem %s3, %s385
      // Predicated region
      $region41: #{_lambda_.3} parent=31 // pred_check
        %p387 = pneg %p148
      $region42: #{_lambda_.3} parent=31 // pred_check_branch
        %389 = sbr.rel (%p387) target = $region44
      $region43: #{_lambda_.3} parent=31 // pred_region
        %s390 = smul.u32 2, %s21
      $region44: #{_lambda_.3} parent=31 // pred_fallthru
        _
    $region32: #{_lambda_.3} parent=5 // pred_fallthru
      _
    %p391 = scmp.le.s32.totalorder 2, %s9
    // Predicated region
    $region45: #{_lambda_.3} parent=5 // pred_check
      %p392 = pneg %p391
    $region46: #{_lambda_.3} parent=5 // pred_check_branch
      %394 = sbr.rel (%p392) target = $region48
    $region47: #{_lambda_.3} parent=5 // pred_region
      %s395 = ssub.s32 %s9, 2
      // Predicated region
      $region49: #{_lambda_.3} parent=47 // pred_check
        %p396 = pneg %p154
      $region50: #{_lambda_.3} parent=47 // pred_check_branch
        %398 = sbr.rel (%p396) target = $region52
      $region51: #{_lambda_.3} parent=47 // pred_region
        %s399 = smul.u32 2, %s25
        %p400 = scmp.lt.s32.totalorder %s24, 2
        %s401 = scalar_select %p400, %s24, 2
        %p402 = scmp.lt.s32.totalorder %s399, 1
        %s403 = scalar_select %p402, %s399, 1
        %p404 = scmp.lt.s32.totalorder %s26, 0
        %s405 = scalar_select %p404, %s26, 0
        %s406 = sadd.s32 %s405, %s403
        %s407 = smul.addr %s401, 2
        %s408 = sadd.s32 %s406, %s407
        %s409 = smul.addr %s408, 8
        %s410 = scalar_lea.vmem %s3, %s409
      $region52: #{_lambda_.3} parent=47 // pred_fallthru
        _
    $region48: #{_lambda_.3} parent=5 // pred_fallthru
      _
  $region6: #{_lambda_.3} parent=0 // loop_footer
    %s13 = sadd.s32 1, %s9
  $region7: #{_lambda_.3} parent=0 // loop_footer_branch
    %8 = sbr.rel target = $region3
  $region8: #{_lambda_.3} parent=0 // loop_exit
    _

// kernel: _lambda_.4
$region0: #{_lambda_.4}
  #allocation0 [shape = 'u32[]', space=smem, size = 0x4, offset = 0x4, fixed_abs, tag = 'smem constant byte address 0x4 - core index']
  #allocation1 [shape = 'u32[72,128]{1,0:T(1,128)}', space=vmem, size = 0x9000, scoped, tag = 'internal scratch']
  #allocation2 [shape = 'f32[8,32]{1,0:T(8,128)}', space=vmem, size = 0x1000, scoped, tag = 'scratch operand']
  #allocation3 [shape = 'f32[8,32]{1,0:T(8,128)}', space=vmem, size = 0x1000, scoped, tag = 'scratch operand']
  #allocation4 [shape = 'f32[8,32]{1,0:T(8,128)}', space=vmem, size = 0x1000, scoped, tag = 'scratch operand']
  %s0 = inlined_call_operand.vmem [shape: f32[3,2,8,32], index: 0, kind: input, shape index: {}, may-alias: {0,1,2}]
  %s1 = inlined_call_operand.vmem [shape: f32[3,2,8,32], index: 1, kind: input, shape index: {}, may-alias: {0,1,2}]
  %s2 = inlined_call_operand.vmem [shape: f32[3,2,8,32], index: 2, kind: input, shape index: {}, may-alias: {0,1,2}]
  %s3 = inlined_call_operand.vmem [shape: f32[2,8,32], index: 3, kind: output, shape index: {}]
  %s4 = sld [smem:[#allocation0]]
  $region57: #{_lambda_.4} parent=0
    _
  %s6 = ssub.s32 1, %s4
  %s7 = scalar_select 0, %s6, %s4
  loop: start=0, step=1, limit=4
  $region2: #{_lambda_.4} parent=0 // loop_pre_header
    _
  $region3: #{_lambda_.4} parent=0 // loop_header
    %s9 = sphi 0, %s13
    %p10 = scmp.ge.s32.totalorder %s9, 4
    %s16 = sphi 0, %s35
    %s17 = sphi 0, %s31
    %s18 = sphi 0, %s27
    %s19 = sphi 0, %s16
    %s20 = sphi 0, %s17
    %s21 = sphi 0, %s18
    %s22 = sphi 0, %s19
    %s23 = sphi 0, %s20
    %s24 = sphi 0, %s21
    %s40 = sphi 0, %s42
    %s43 = sphi 0, %s40
    %s44 = sphi 0, %s43
    %s60 = sphi 0, %s44
    %s68 = sphi 0, %s70
    %s71 = sphi 0, %s68
    %s72 = sphi 0, %s71
    %s88 = sphi 0, %s72
    %s96 = sphi 0, %s98
    %s99 = sphi 0, %s96
    %s100 = sphi 0, %s99
    %s116 = sphi 0, %s100
    %s124 = sphi 0, %s126
    %s127 = sphi 0, %s124
    %s128 = sphi 0, %s127
    %s144 = sphi 0, %s128
  $region4: #{_lambda_.4} parent=0 // loop_header_branch
    %12 = sbr.rel (%p10) target = $region8
  $region5: #{_lambda_.4} parent=0 // loop_body
    %s14 = ssub.s32 %s9, 1
    %s15 = ssub.s32 %s9, 2
    %s25 = sadd.s32 1, %s18
    %p26 = scmp.ge.s32.totalorder %s25, 1
    %s27 = scalar_select %p26, 0, %s25
    %s28 = sadd.s32 1, %s17
    %s29 = scalar_select %p26, %s28, %s17
    %p30 = scmp.ge.s32.totalorder %s29, 1
    %s31 = scalar_select %p30, 0, %s29
    %s32 = sadd.s32 1, %s16
    %s33 = scalar_select %p30, %s32, %s16
    %p34 = scmp.ge.s32.totalorder %s33, 2
    %s35 = scalar_select %p34, 0, %s33
    %s36 = ssub.s32 %s16, %s35
    %s37 = ssub.s32 %s17, %s31
    %s38 = sor.u32 %s36, %s37
    %p39 = scmp.eq.s32.totalorder %s38, 0
    %s41 = sadd.s32 %s40, 1
    %s42 = scalar_select %p39, %s40, %s41
    %p45 = pneg %p39
    %p46 = scmp.eq.s32.totalorder %s9, 1
    %p47 = por %p45, %p46
    %p48 = scmp.ne.s32.totalorder %s40, %s43
    %p49 = scmp.eq.s32.totalorder %s9, 0
    %p50 = por %p48, %p49
    %p51 = scmp.ne.s32.totalorder %s40, %s43
    %p52 = scmp.eq.s32.totalorder %s14, 1
    %p53 = por %p51, %p52
    %p54 = scmp.ne.s32.totalorder %s43, %s44
    %p55 = scmp.eq.s32.totalorder %s14, 0
    %p56 = por %p54, %p55
    %p57 = scmp.ne.s32.totalorder %s43, %s44
    %p58 = scmp.eq.s32.totalorder %s15, 1
    %p59 = por %p57, %p58
    %p61 = scmp.ne.s32.totalorder %s44, %s60
    %p62 = scmp.eq.s32.totalorder %s15, 0
    %p63 = por %p61, %p62
    %s64 = ssub.s32 %s16, %s35
    %s65 = ssub.s32 %s18, %s27
    %s66 = sor.u32 %s64, %s65
    %p67 = scmp.eq.s32.totalorder %s66, 0
    %s69 = sadd.s32 %s68, 1
    %s70 = scalar_select %p67, %s68, %s69
    %p73 = pneg %p67
    %p74 = scmp.eq.s32.totalorder %s9, 1
    %p75 = por %p73, %p74
    %p76 = scmp.ne.s32.totalorder %s68, %s71
    %p77 = scmp.eq.s32.totalorder %s9, 0
    %p78 = por %p76, %p77
    %p79 = scmp.ne.s32.totalorder %s68, %s71
    %p80 = scmp.eq.s32.totalorder %s14, 1
    %p81 = por %p79, %p80
    %p82 = scmp.ne.s32.totalorder %s71, %s72
    %p83 = scmp.eq.s32.totalorder %s14, 0
    %p84 = por %p82, %p83
    %p85 = scmp.ne.s32.totalorder %s71, %s72
    %p86 = scmp.eq.s32.totalorder %s15, 1
    %p87 = por %p85, %p86
    %p89 = scmp.ne.s32.totalorder %s72, %s88
    %p90 = scmp.eq.s32.totalorder %s15, 0
    %p91 = por %p89, %p90
    %s92 = ssub.s32 %s16, %s35
    %s93 = ssub.s32 %s18, %s27
    %s94 = sor.u32 %s92, %s93
    %p95 = scmp.eq.s32.totalorder %s94, 0
    %s97 = sadd.s32 %s96, 1
    %s98 = scalar_select %p95, %s96, %s97
    %p101 = pneg %p95
    %p102 = scmp.eq.s32.totalorder %s9, 1
    %p103 = por %p101, %p102
    %p104 = scmp.ne.s32.totalorder %s96, %s99
    %p105 = scmp.eq.s32.totalorder %s9, 0
    %p106 = por %p104, %p105
    %p107 = scmp.ne.s32.totalorder %s96, %s99
    %p108 = scmp.eq.s32.totalorder %s14, 1
    %p109 = por %p107, %p108
    %p110 = scmp.ne.s32.totalorder %s99, %s100
    %p111 = scmp.eq.s32.totalorder %s14, 0
    %p112 = por %p110, %p111
    %p113 = scmp.ne.s32.totalorder %s99, %s100
    %p114 = scmp.eq.s32.totalorder %s15, 1
    %p115 = por %p113, %p114
    %p117 = scmp.ne.s32.totalorder %s100, %s116
    %p118 = scmp.eq.s32.totalorder %s15, 0
    %p119 = por %p117, %p118
    %s120 = ssub.s32 %s16, %s35
    %s121 = ssub.s32 %s17, %s31
    %s122 = sor.u32 %s120, %s121
    %p123 = scmp.eq.s32.totalorder %s122, 0
    %s125 = sadd.s32 %s124, 1
    %s126 = scalar_select %p123, %s124, %s125
    %p129 = pneg %p123
    %p130 = scmp.eq.s32.totalorder %s9, 1
    %p131 = por %p129, %p130
    %p132 = scmp.ne.s32.totalorder %s124, %s127
    %p133 = scmp.eq.s32.totalorder %s9, 0
    %p134 = por %p132, %p133
    %p135 = scmp.ne.s32.totalorder %s124, %s127
    %p136 = scmp.eq.s32.totalorder %s14, 1
    %p137 = por %p135, %p136
    %p138 = scmp.ne.s32.totalorder %s127, %s128
    %p139 = scmp.eq.s32.totalorder %s14, 0
    %p140 = por %p138, %p139
    %p141 = scmp.ne.s32.totalorder %s127, %s128
    %p142 = scmp.eq.s32.totalorder %s15, 1
    %p143 = por %p141, %p142
    %p145 = scmp.ne.s32.totalorder %s128, %s144
    %p146 = scmp.eq.s32.totalorder %s15, 0
    %p147 = por %p145, %p146
    %p148 = scmp.le.s32.totalorder 1, %s9
    %p149 = scmp.lt.s32.totalorder %s9, 3
    %p150 = pnand %p148, %p149
    %p151 = pneg %p150
    // Predicated region
    $region9: #{_lambda_.4} parent=5 // pred_check
      _
    $region10: #{_lambda_.4} parent=5 // pred_check_branch
      %153 = sbr.rel (%p150) target = $region12
    $region11: #{_lambda_.4} parent=5 // pred_region
      %s154 = ssub.s32 %s9, 1
    $region12: #{_lambda_.4} parent=5 // pred_fallthru
      _
    %p155 = scmp.lt.s32.totalorder %s9, 2
    // Predicated region
    $region13: #{_lambda_.4} parent=5 // pred_check
      %p156 = pneg %p155
    $region14: #{_lambda_.4} parent=5 // pred_check_branch
      %158 = sbr.rel (%p156) target = $region16
    $region15: #{_lambda_.4} parent=5 // pred_region
      // Predicated region
      $region17: #{_lambda_.4} parent=15 // pred_check
        %p159 = pneg %p50
      $region18: #{_lambda_.4} parent=15 // pred_check_branch
        %161 = sbr.rel (%p159) target = $region20
      $region19: #{_lambda_.4} parent=15 // pred_region
        %p162 = scmp.lt.s32.totalorder %s16, 1
        %s163 = scalar_select %p162, %s16, 1
        %p164 = scmp.lt.s32.totalorder %s17, 0
        %s165 = scalar_select %p164, %s17, 0
        %s166 = sadd.s32 %s165, %s163
        %s167 = smul.addr %s166, 8
        %s168 = scalar_lea.vmem %s0, %s167
      $region20: #{_lambda_.4} parent=15 // pred_fallthru
        _
      // Predicated region
      $region21: #{_lambda_.4} parent=15 // pred_check
        %p169 = pneg %p78
      $region22: #{_lambda_.4} parent=15 // pred_check_branch
        %171 = sbr.rel (%p169) target = $region24
      $region23: #{_lambda_.4} parent=15 // pred_region
        %p172 = scmp.lt.s32.totalorder %s16, 1
        %s173 = scalar_select %p172, %s16, 1
        %p174 = scmp.lt.s32.totalorder %s18, 0
        %s175 = scalar_select %p174, %s18, 0
        %s176 = sadd.s32 %s175, %s173
        %s177 = sadd.s32 %s176, 2
        %s178 = smul.addr %s177, 8
        %s179 = scalar_lea.vmem %s1, %s178
      $region24: #{_lambda_.4} parent=15 // pred_fallthru
        _
      // Predicated region
      $region25: #{_lambda_.4} parent=15 // pred_check
        %p180 = pneg %p106
      $region26: #{_lambda_.4} parent=15 // pred_check_branch
        %182 = sbr.rel (%p180) target = $region28
      $region27: #{_lambda_.4} parent=15 // pred_region
        %p183 = scmp.lt.s32.totalorder %s16, 1
        %s184 = scalar_select %p183, %s16, 1
        %p185 = scmp.lt.s32.totalorder %s18, 0
        %s186 = scalar_select %p185, %s18, 0
        %s187 = sadd.s32 %s186, %s184
        %s188 = sadd.s32 %s187, 4
        %s189 = smul.addr %s188, 8
        %s190 = scalar_lea.vmem %s2, %s189
      $region28: #{_lambda_.4} parent=15 // pred_fallthru
        _
    $region16: #{_lambda_.4} parent=5 // pred_fallthru
      _
    %p191 = scmp.le.s32.totalorder 1, %s9
    %p192 = scmp.lt.s32.totalorder %s9, 3
    %p193 = pnand %p191, %p192
    %p194 = pneg %p193
    // Predicated region
    $region29: #{_lambda_.4} parent=5 // pred_check
      _
    $region30: #{_lambda_.4} parent=5 // pred_check_branch
      %196 = sbr.rel (%p193) target = $region32
    $region31: #{_lambda_.4} parent=5 // pred_region
      %s197 = ssub.s32 %s9, 1
      %p198 = scmp.lt.s32.totalorder %s19, 1
      %s199 = scalar_select %p198, %s19, 1
      %p200 = scmp.lt.s32.totalorder %s20, 0
      %s201 = scalar_select %p200, %s20, 0
      %s202 = sadd.s32 %s201, %s199
      %s203 = smul.addr %s202, 8
      %s204 = scalar_lea.vmem %s0, %s203
      %p205 = pneg %p56
      %p206 = pneg %p53
      %p207 = scmp.lt.s32.totalorder %s19, 1
      %s208 = scalar_select %p207, %s19, 1
      %p209 = scmp.lt.s32.totalorder %s21, 0
      %s210 = scalar_select %p209, %s21, 0
      %s211 = sadd.s32 %s210, %s208
      %s212 = sadd.s32 %s211, 2
      %s213 = smul.addr %s212, 8
      %s214 = scalar_lea.vmem %s1, %s213
      %p215 = pneg %p84
      %p216 = pneg %p81
      %p217 = scmp.lt.s32.totalorder %s19, 1
      %s218 = scalar_select %p217, %s19, 1
      %p219 = scmp.lt.s32.totalorder %s21, 0
      %s220 = scalar_select %p219, %s21, 0
      %s221 = sadd.s32 %s220, %s218
      %s222 = sadd.s32 %s221, 4
      %s223 = smul.addr %s222, 8
      %s224 = scalar_lea.vmem %s2, %s223
      %p225 = pneg %p112
      %p226 = pneg %p109
      %p227 = pneg %p140
      %p228 = pneg %p137
      %p229 = scmp.lt.s32.totalorder %s19, 1
      %s230 = scalar_select %p229, %s19, 1
      %p231 = scmp.lt.s32.totalorder %s20, 0
      %s232 = scalar_select %p231, %s20, 0
      %s233 = sadd.s32 %s232, %s230
      %s234 = smul.addr %s233, 8
      %s235 = scalar_lea.vmem %s3, %s234
      %p236 = scmp.lt.s32.totalorder %s19, 1
      %s237 = scalar_select %p236, %s19, 1
      %p238 = scmp.lt.s32.totalorder %s20, 0
      %s239 = scalar_select %p238, %s20, 0
      %s240 = sadd.s32 %s239, %s237
      %s241 = smul.addr %s240, 8
      %s242 = scalar_lea.vmem %s0, %s241
      %p243 = scmp.lt.s32.totalorder %s19, 1
      %s244 = scalar_select %p243, %s19, 1
      %p245 = scmp.lt.s32.totalorder %s21, 0
      %s246 = scalar_select %p245, %s21, 0
      %s247 = sadd.s32 %s246, %s244
      %s248 = sadd.s32 %s247, 2
      %s249 = smul.addr %s248, 8
      %s250 = scalar_lea.vmem %s1, %s249
      %p251 = scmp.lt.s32.totalorder %s19, 1
      %s252 = scalar_select %p251, %s19, 1
      %p253 = scmp.lt.s32.totalorder %s21, 0
      %s254 = scalar_select %p253, %s21, 0
      %s255 = sadd.s32 %s254, %s252
      %s256 = sadd.s32 %s255, 4
      %s257 = smul.addr %s256, 8
      %s258 = scalar_lea.vmem %s2, %s257
      %p259 = scmp.lt.s32.totalorder %s19, 1
      %s260 = scalar_select %p259, %s19, 1
      %p261 = scmp.lt.s32.totalorder %s20, 0
      %s262 = scalar_select %p261, %s20, 0
      %s263 = sadd.s32 %s262, %s260
      %s264 = smul.addr %s263, 8
      %s265 = scalar_lea.vmem %s3, %s264
      %s266 = smul.u32 %s20, 8
      %s267 = smul.u32 %s21, 8
      %p268 = scmp.eq.s32.totalorder %s21, 0
      // Predicated region
      $region33: #{_lambda_.4} parent=31 // pred_check
        %p269 = pneg %p268
      $region34: #{_lambda_.4} parent=31 // pred_check_branch
        %271 = sbr.rel (%p269) target = $region36
      $region35: #{_lambda_.4} parent=31 // pred_region
        %vm272 = vcmask 261120
        %273 = vst.msk [vmem:[#allocation2] sm:$0xff] %vm272, -1e+30
        %274 = vst.msk [vmem:[#allocation3] sm:$0xff] %vm272, 0.0
        %275 = vst.msk [vmem:[#allocation4] sm:$0xff] %vm272, 0.0
      $region36: #{_lambda_.4} parent=31 // pred_fallthru
        _
      %s276 = sadd.s32 %s266, 7
      %p277 = scmp.le.s32.totalorder %s267, %s276
      // Predicated region
      $region37: #{_lambda_.4} parent=31 // pred_check
        %p278 = pneg %p277
      $region38: #{_lambda_.4} parent=31 // pred_check_branch
        %280 = sbr.rel (%p278) target = $region40
      $region39: #{_lambda_.4} parent=31 // pred_region
        %v281 = vld [vmem:[%s242] sm:$0xff]
        %v282 = vld [vmem:[%s250] sm:$0xff]
        %v283 = vld [vmem:[%s258] sm:$0xff]
        %v284 = vlaneseq
        %v285 = vshrl.u32 %v284, 7
        %v286 = vstv %s266
        %v287 = vadd.s32 %v286, %v285
        %v288 = vlaneseq
        %v289 = vand.u32 %v288, 127
        %v290 = vstv %s267
        %v291 = vadd.s32 %v290, %v289
        %vm292 = vcmp.le.s32.totalorder %v291, %v287
        %vm293 = vcmask 64512
        %v295 = vsel %vm293, %v281, 0
        %v298 = vsel %vm293, %v282, 0
        %300 = vmatpush.xpose.msra.mxu0 0.0
        %301 = vmatpush.xpose.msra.mxu0 0.0
        %302 = vmatpush.xpose.msra.mxu0 0.0
        %303 = vmatpush.xpose.msra.mxu0 0.0
        %304 = vmatpush.xpose.msra.mxu0 0.0
        %305 = vmatpush.xpose.msra.mxu0 0.0
        %306 = vmatpush.xpose.msra.mxu0 0.0
        %307 = vmatpush.xpose.msra.mxu0 0.0
        %308 = vmatpush.xpose.msra.mxu0 0.0
        %309 = vmatpush.xpose.msra.mxu0 0.0
        %310 = vmatpush.xpose.msra.mxu0 0.0
        %311 = vmatpush.xpose.msra.mxu0 0.0
        %312 = vmatpush.xpose.msra.mxu0 0.0
        %313 = vmatpush.xpose.msra.mxu0 0.0
        %314 = vmatpush.xpose.msra.mxu0 0.0
        %315 = vmatpush.xpose.msra.mxu0 %v298
        %316 = vmatmul.f32.gmra.mxu0 %v295
        %v317 = vpop.f32.mrf.mxu0
        %v318 = vadd.f32 0.0, %v317
        %319 = vdwg.mxu0
        %v320 = vmul.f32 %v318, 0.35355338
        %v321 = vsel %vm292, %v320, -1e+30
        %v322 = vld [vmem:[#allocation2] sm:$0xff]
        %v323 = vsel %vm293, %v321, -inf
        %324 = vmax.xlane.f32.xlu0 %v323
        %v325 = vpop.xlane.xlu0 %324
        %v326 = vmax.f32 %v322, %v325
        %v327 = vsub.f32 %v322, %v326
        %v328 = vmul.f32 %v327, 1.442695
        %v329 = vpow.pop %v328
        %331 = vset.pattern.permute.xlu0 0
        %332 = vperm.xlu0 %331, %v326
        %v333 = vpop.permute.xlu0 %332
        %v335 = vsub.f32 %v321, %v333
        %v336 = vmul.f32 %v335, 1.442695
        %v337 = vpow.pop %v336
        %v338 = vsel %vm292, %v337, 0.0
        %v339 = vld [vmem:[#allocation3] sm:$0xff]
        %v340 = vmul.f32 %v329, %v339
        %v341 = vsel %vm293, %v338, 0.0
        %342 = vadd.xlane.f32.xlu0 %v341
        %v343 = vpop.xlane.xlu0 %342
        %v344 = vadd.f32 %v340, %v343
        %345 = vst.msk [vmem:[#allocation3] sm:$0xff] %vm293, %v344
        %v346 = vld [vmem:[#allocation4] sm:$0xff]
        %v347 = vmul.f32 %v329, %v346
        %v349 = vsel %vm293, %v338, 0
        %351 = vmatpush.msra.mxu0 0.0
        %352 = vmatpush.msra.mxu0 0.0
        %353 = vmatpush.msra.mxu0 0.0
        %354 = vmatpush.msra.mxu0 0.0
        %355 = vmatpush.msra.mxu0 0.0
        %356 = vmatpush.msra.mxu0 0.0
        %357 = vmatpush.msra.mxu0 0.0
        %358 = vmatpush.msra.mxu0 0.0
        %359 = vmatpush.msra.mxu0 0.0
        %360 = vmatpush.msra.mxu0 0.0
        %361 = vmatpush.msra.mxu0 0.0
        %362 = vmatpush.msra.mxu0 0.0
        %363 = vmatpush.msra.mxu0 0.0
        %364 = vmatpush.msra.mxu0 0.0
        %365 = vmatpush.msra.mxu0 0.0
        %366 = vmatpush.msra.mxu0 %v283
        %367 = vmatmul.f32.gmra.mxu0 %v349
        %v368 = vpop.f32.mrf.mxu0
        %v369 = vadd.f32 0.0, %v368
        %370 = vdwg.mxu0
        %v371 = vadd.f32 %v347, %v369
        %372 = vst.msk [vmem:[#allocation4] sm:$0xff] %vm293, %v371
        %373 = vst.msk [vmem:[#allocation2] sm:$0xff] %vm293, %v326
        %374 = vrot.lane.b32.xlu0 %v281, 120
        %v375 = vpop.permute.xlu0 %374
        %376 = vrot.lane.b32.xlu0 %v282, 120
        %v377 = vpop.permute.xlu0 %376
        %v378 = vsel %vm293, %v375, 0
        %v380 = vsel %vm293, %v377, 0
        %382 = vmatpush.xpose.msra.mxu0 0.0
        %383 = vmatpush.xpose.msra.mxu0 0.0
        %384 = vmatpush.xpose.msra.mxu0 0.0
        %385 = vmatpush.xpose.msra.mxu0 0.0
        %386 = vmatpush.xpose.msra.mxu0 0.0
        %387 = vmatpush.xpose.msra.mxu0 0.0
        %388 = vmatpush.xpose.msra.mxu0 0.0
        %389 = vmatpush.xpose.msra.mxu0 0.0
        %390 = vmatpush.xpose.msra.mxu0 0.0
        %391 = vmatpush.xpose.msra.mxu0 0.0
        %392 = vmatpush.xpose.msra.mxu0 0.0
        %393 = vmatpush.xpose.msra.mxu0 0.0
        %394 = vmatpush.xpose.msra.mxu0 0.0
        %395 = vmatpush.xpose.msra.mxu0 0.0
        %396 = vmatpush.xpose.msra.mxu0 0.0
        %397 = vmatpush.xpose.msra.mxu0 %v380
        %398 = vmatmul.f32.gmra.mxu0 %v378
        %v399 = vpop.f32.mrf.mxu0
        %v400 = vadd.f32 0.0, %v399
        %401 = vdwg.mxu0
        %v402 = vmul.f32 %v400, 0.35355338
        %v403 = vsel %vm292, %v402, -1e+30
        %v404 = vld [vmem:[#allocation2] sm:$0xff]
        %v405 = vsel %vm293, %v403, -inf
        %406 = vmax.xlane.f32.xlu0 %v405
        %v407 = vpop.xlane.xlu0 %406
        %v408 = vmax.f32 %v404, %v407
        %v409 = vsub.f32 %v404, %v408
        %v410 = vmul.f32 %v409, 1.442695
        %v411 = vpow.pop %v410
        %413 = vset.pattern.permute.xlu0 8
        %414 = vperm.xlu0 %413, %v408
        %v415 = vpop.permute.xlu0 %414
        %v417 = vsub.f32 %v403, %v415
        %v418 = vmul.f32 %v417, 1.442695
        %v419 = vpow.pop %v418
        %v420 = vsel %vm292, %v419, 0.0
        %v421 = vld [vmem:[#allocation3] sm:$0xff]
        %v422 = vmul.f32 %v411, %v421
        %v423 = vsel %vm293, %v420, 0.0
        %424 = vadd.xlane.f32.xlu0 %v423
        %v425 = vpop.xlane.xlu0 %424
        %v426 = vadd.f32 %v422, %v425
        %vm427 = vcmask 130112
        %428 = vst.msk [vmem:[#allocation3] sm:$0xff] %vm427, %v426
        %v429 = vld [vmem:[#allocation4] sm:$0xff]
        %v430 = vmul.f32 %v411, %v429
        %432 = vrot.lane.b32.xlu0 %v283, 120
        %v433 = vpop.permute.xlu0 %432
        %v436 = vsel %vm293, %v420, 0
        %438 = vmatpush.msra.mxu0 0.0
        %439 = vmatpush.msra.mxu0 0.0
        %440 = vmatpush.msra.mxu0 0.0
        %441 = vmatpush.msra.mxu0 0.0
        %442 = vmatpush.msra.mxu0 0.0
        %443 = vmatpush.msra.mxu0 0.0
        %444 = vmatpush.msra.mxu0 0.0
        %445 = vmatpush.msra.mxu0 0.0
        %446 = vmatpush.msra.mxu0 0.0
        %447 = vmatpush.msra.mxu0 0.0
        %448 = vmatpush.msra.mxu0 0.0
        %449 = vmatpush.msra.mxu0 0.0
        %450 = vmatpush.msra.mxu0 0.0
        %451 = vmatpush.msra.mxu0 0.0
        %452 = vmatpush.msra.mxu0 0.0
        %453 = vmatpush.msra.mxu0 %v433
        %454 = vmatmul.f32.gmra.mxu0 %v436
        %v455 = vpop.f32.mrf.mxu0
        %v456 = vadd.f32 0.0, %v455
        %457 = vdwg.mxu0
        %459 = vrot.lane.b32.xlu0 %v456, 8
        %v460 = vpop.permute.xlu0 %459
        %v462 = vadd.f32 %v430, %v460
        %463 = vst.msk [vmem:[#allocation4] sm:$0xff] %vm427, %v462
        %464 = vst.msk [vmem:[#allocation2] sm:$0xff] %vm427, %v408
        %465 = vrot.lane.b32.xlu0 %v281, 112
        %v466 = vpop.permute.xlu0 %465
        %467 = vrot.lane.b32.xlu0 %v282, 112
        %v468 = vpop.permute.xlu0 %467
        %v469 = vsel %vm293, %v466, 0
        %v471 = vsel %vm293, %v468, 0
        %473 = vmatpush.xpose.msra.mxu0 0.0
        %474 = vmatpush.xpose.msra.mxu0 0.0
        %475 = vmatpush.xpose.msra.mxu0 0.0
        %476 = vmatpush.xpose.msra.mxu0 0.0
        %477 = vmatpush.xpose.msra.mxu0 0.0
        %478 = vmatpush.xpose.msra.mxu0 0.0
        %479 = vmatpush.xpose.msra.mxu0 0.0
        %480 = vmatpush.xpose.msra.mxu0 0.0
        %481 = vmatpush.xpose.msra.mxu0 0.0
        %482 = vmatpush.xpose.msra.mxu0 0.0
        %483 = vmatpush.xpose.msra.mxu0 0.0
        %484 = vmatpush.xpose.msra.mxu0 0.0
        %485 = vmatpush.xpose.msra.mxu0 0.0
        %486 = vmatpush.xpose.msra.mxu0 0.0
        %487 = vmatpush.xpose.msra.mxu0 0.0
        %488 = vmatpush.xpose.msra.mxu0 %v471
        %489 = vmatmul.f32.gmra.mxu0 %v469
        %v490 = vpop.f32.mrf.mxu0
        %v491 = vadd.f32 0.0, %v490
        %492 = vdwg.mxu0
        %v493 = vmul.f32 %v491, 0.35355338
        %v494 = vsel %vm292, %v493, -1e+30
        %v495 = vld [vmem:[#allocation2] sm:$0xff]
        %v496 = vsel %vm293, %v494, -inf
        %497 = vmax.xlane.f32.xlu0 %v496
        %v498 = vpop.xlane.xlu0 %497
        %v499 = vmax.f32 %v495, %v498
        %v500 = vsub.f32 %v495, %v499
        %v501 = vmul.f32 %v500, 1.442695
        %v502 = vpow.pop %v501
        %504 = vset.pattern.permute.xlu0 16
        %505 = vperm.xlu0 %504, %v499
        %v506 = vpop.permute.xlu0 %505
        %v508 = vsub.f32 %v494, %v506
        %v509 = vmul.f32 %v508, 1.442695
        %v510 = vpow.pop %v509
        %v511 = vsel %vm292, %v510, 0.0
        %v512 = vld [vmem:[#allocation3] sm:$0xff]
        %v513 = vmul.f32 %v502, %v512
        %v514 = vsel %vm293, %v511, 0.0
        %515 = vadd.xlane.f32.xlu0 %v514
        %v516 = vpop.xlane.xlu0 %515
        %v517 = vadd.f32 %v513, %v516
        %vm518 = vcmask 195712
        %519 = vst.msk [vmem:[#allocation3] sm:$0xff] %vm518, %v517
        %v520 = vld [vmem:[#allocation4] sm:$0xff]
        %v521 = vmul.f32 %v502, %v520
        %522 = vrot.lane.b32.xlu0 %v283, 112
        %v523 = vpop.permute.xlu0 %522
        %v526 = vsel %vm293, %v511, 0
        %528 = vmatpush.msra.mxu0 0.0
        %529 = vmatpush.msra.mxu0 0.0
        %530 = vmatpush.msra.mxu0 0.0
        %531 = vmatpush.msra.mxu0 0.0
        %532 = vmatpush.msra.mxu0 0.0
        %533 = vmatpush.msra.mxu0 0.0
        %534 = vmatpush.msra.mxu0 0.0
        %535 = vmatpush.msra.mxu0 0.0
        %536 = vmatpush.msra.mxu0 0.0
        %537 = vmatpush.msra.mxu0 0.0
        %538 = vmatpush.msra.mxu0 0.0
        %539 = vmatpush.msra.mxu0 0.0
        %540 = vmatpush.msra.mxu0 0.0
        %541 = vmatpush.msra.mxu0 0.0
        %542 = vmatpush.msra.mxu0 0.0
        %543 = vmatpush.msra.mxu0 %v523
        %544 = vmatmul.f32.gmra.mxu0 %v526
        %v545 = vpop.f32.mrf.mxu0
        %v546 = vadd.f32 0.0, %v545
        %547 = vdwg.mxu0
        %549 = vrot.lane.b32.xlu0 %v546, 16
        %v550 = vpop.permute.xlu0 %549
        %v552 = vadd.f32 %v521, %v550
        %553 = vst.msk [vmem:[#allocation4] sm:$0xff] %vm518, %v552
        %554 = vst.msk [vmem:[#allocation2] sm:$0xff] %vm518, %v499
        %555 = vrot.lane.b32.xlu0 %v281, 104
        %v556 = vpop.permute.xlu0 %555
        %557 = vrot.lane.b32.xlu0 %v282, 104
        %v558 = vpop.permute.xlu0 %557
        %v559 = vsel %vm293, %v556, 0
        %v561 = vsel %vm293, %v558, 0
        %563 = vmatpush.xpose.msra.mxu0 0.0
        %564 = vmatpush.xpose.msra.mxu0 0.0
        %565 = vmatpush.xpose.msra.mxu0 0.0
        %566 = vmatpush.xpose.msra.mxu0 0.0
        %567 = vmatpush.xpose.msra.mxu0 0.0
        %568 = vmatpush.xpose.msra.mxu0 0.0
        %569 = vmatpush.xpose.msra.mxu0 0.0
        %570 = vmatpush.xpose.msra.mxu0 0.0
        %571 = vmatpush.xpose.msra.mxu0 0.0
        %572 = vmatpush.xpose.msra.mxu0 0.0
        %573 = vmatpush.xpose.msra.mxu0 0.0
        %574 = vmatpush.xpose.msra.mxu0 0.0
        %575 = vmatpush.xpose.msra.mxu0 0.0
        %576 = vmatpush.xpose.msra.mxu0 0.0
        %577 = vmatpush.xpose.msra.mxu0 0.0
        %578 = vmatpush.xpose.msra.mxu0 %v561
        %579 = vmatmul.f32.gmra.mxu0 %v559
        %v580 = vpop.f32.mrf.mxu0
        %v581 = vadd.f32 0.0, %v580
        %582 = vdwg.mxu0
        %v583 = vmul.f32 %v581, 0.35355338
        %v584 = vsel %vm292, %v583, -1e+30
        %v585 = vld [vmem:[#allocation2] sm:$0xff]
        %v586 = vsel %vm293, %v584, -inf
        %587 = vmax.xlane.f32.xlu0 %v586
        %v588 = vpop.xlane.xlu0 %587
        %v589 = vmax.f32 %v585, %v588
        %v590 = vsub.f32 %v585, %v589
        %v591 = vmul.f32 %v590, 1.442695
        %v592 = vpow.pop %v591
        %594 = vset.pattern.permute.xlu0 24
        %595 = vperm.xlu0 %594, %v589
        %v596 = vpop.permute.xlu0 %595
        %v598 = vsub.f32 %v584, %v596
        %v599 = vmul.f32 %v598, 1.442695
        %v600 = vpow.pop %v599
        %v601 = vsel %vm292, %v600, 0.0
        %v602 = vld [vmem:[#allocation3] sm:$0xff]
        %v603 = vmul.f32 %v592, %v602
        %v604 = vsel %vm293, %v601, 0.0
        %605 = vadd.xlane.f32.xlu0 %v604
        %v606 = vpop.xlane.xlu0 %605
        %v607 = vadd.f32 %v603, %v606
        %vm608 = vcmask 261312
        %609 = vst.msk [vmem:[#allocation3] sm:$0xff] %vm608, %v607
        %v610 = vld [vmem:[#allocation4] sm:$0xff]
        %v611 = vmul.f32 %v592, %v610
        %612 = vrot.lane.b32.xlu0 %v283, 104
        %v613 = vpop.permute.xlu0 %612
        %v616 = vsel %vm293, %v601, 0
        %618 = vmatpush.msra.mxu0 0.0
        %619 = vmatpush.msra.mxu0 0.0
        %620 = vmatpush.msra.mxu0 0.0
        %621 = vmatpush.msra.mxu0 0.0
        %622 = vmatpush.msra.mxu0 0.0
        %623 = vmatpush.msra.mxu0 0.0
        %624 = vmatpush.msra.mxu0 0.0
        %625 = vmatpush.msra.mxu0 0.0
        %626 = vmatpush.msra.mxu0 0.0
        %627 = vmatpush.msra.mxu0 0.0
        %628 = vmatpush.msra.mxu0 0.0
        %629 = vmatpush.msra.mxu0 0.0
        %630 = vmatpush.msra.mxu0 0.0
        %631 = vmatpush.msra.mxu0 0.0
        %632 = vmatpush.msra.mxu0 0.0
        %633 = vmatpush.msra.mxu0 %v613
        %634 = vmatmul.f32.gmra.mxu0 %v616
        %v635 = vpop.f32.mrf.mxu0
        %v636 = vadd.f32 0.0, %v635
        %637 = vdwg.mxu0
        %639 = vrot.lane.b32.xlu0 %v636, 24
        %v640 = vpop.permute.xlu0 %639
        %v642 = vadd.f32 %v611, %v640
        %643 = vst.msk [vmem:[#allocation4] sm:$0xff] %vm608, %v642
        %644 = vst.msk [vmem:[#allocation2] sm:$0xff] %vm608, %v589
      $region40: #{_lambda_.4} parent=31 // pred_fallthru
        _
      // Predicated region
      $region41: #{_lambda_.4} parent=31 // pred_check
        %p645 = pneg %p268
      $region42: #{_lambda_.4} parent=31 // pred_check_branch
        %647 = sbr.rel (%p645) target = $region44
      $region43: #{_lambda_.4} parent=31 // pred_region
        %v648 = vld [vmem:[#allocation3] sm:$0xff]
        %v649 = vrcp.pop %v648
        %v650 = vmul.f32 %v648, %v649
        %v651 = vsub.f32 2.0, %v650
        %v652 = vmul.f32 %v649, %v651
        %v653 = vld [vmem:[#allocation4] sm:$0xff]
        %v654 = vmul.f32 %v653, %v652
        %vm655 = vcmask 261120
        %656 = vst.msk [vmem:[%s265] sm:$0xff] %vm655, %v654
      $region44: #{_lambda_.4} parent=31 // pred_fallthru
        _
      %p657 = scmp.lt.s32.totalorder %s19, 1
      %s658 = scalar_select %p657, %s19, 1
      %p659 = scmp.lt.s32.totalorder %s20, 0
      %s660 = scalar_select %p659, %s20, 0
      %s661 = sadd.s32 %s660, %s658
      %s662 = smul.addr %s661, 8
      %s663 = scalar_lea.vmem %s3, %s662
      // Predicated region
      $region45: #{_lambda_.4} parent=31 // pred_check
        %p664 = pneg %p137
      $region46: #{_lambda_.4} parent=31 // pred_check_branch
        %666 = sbr.rel (%p664) target = $region48
      $region47: #{_lambda_.4} parent=31 // pred_region
        _
      $region48: #{_lambda_.4} parent=31 // pred_fallthru
        _
    $region32: #{_lambda_.4} parent=5 // pred_fallthru
      _
    %p667 = scmp.le.s32.totalorder 2, %s9
    // Predicated region
    $region49: #{_lambda_.4} parent=5 // pred_check
      %p668 = pneg %p667
    $region50: #{_lambda_.4} parent=5 // pred_check_branch
      %670 = sbr.rel (%p668) target = $region52
    $region51: #{_lambda_.4} parent=5 // pred_region
      %s671 = ssub.s32 %s9, 2
      // Predicated region
      $region53: #{_lambda_.4} parent=51 // pred_check
        %p672 = pneg %p143
      $region54: #{_lambda_.4} parent=51 // pred_check_branch
        %674 = sbr.rel (%p672) target = $region56
      $region55: #{_lambda_.4} parent=51 // pred_region
        %p675 = scmp.lt.s32.totalorder %s22, 1
        %s676 = scalar_select %p675, %s22, 1
        %p677 = scmp.lt.s32.totalorder %s23, 0
        %s678 = scalar_select %p677, %s23, 0
        %s679 = sadd.s32 %s678, %s676
        %s680 = smul.addr %s679, 8
        %s681 = scalar_lea.vmem %s3, %s680
      $region56: #{_lambda_.4} parent=51 // pred_fallthru
        _
    $region52: #{_lambda_.4} parent=5 // pred_fallthru
      _
  $region6: #{_lambda_.4} parent=0 // loop_footer
    %s13 = sadd.s32 1, %s9
  $region7: #{_lambda_.4} parent=0 // loop_footer_branch
    %8 = sbr.rel target = $region3
  $region8: #{_lambda_.4} parent=0 // loop_exit
    _

</llo_original>
